<compile_context>
chip_gen: v7x
topology: tpu7x:2x2x1
jax: 0.10.0
libtpu: 0.0.40
codegen_flags: <defaults>
</compile_context>

<pallas_src>
import jax
import jax.numpy as jnp
import numpy as np
from jax.experimental import pallas as pl
from jax.experimental.pallas import tpu as pltpu

L0 = 32                  # input sequence length (divisible by 8 -> the 3 maxpools are exact)
C1, C2, C3 = 32, 64, 64  # channel widths of the three conv layers


def _round_up(n, m):
    return ((n + m - 1) // m) * m


def _conv_pool_matrix(w, L):
    """Banded matrix for Conv1d(kernel=3, padding=1) over L positions.

    Input lane space : position-major, channel-minor -> lane = p*Cin + cin, p in [0, L).
    Output columns   : arranged as [even output positions | odd output positions], each
                       position a contiguous Cout-wide block, so MaxPool1d(2) is
                       max(first half, second half) with a 128-lane-aligned split.
    w: (3, Cin, Cout)  ->  G: (L*Cin, L*Cout)
    """
    w = np.asarray(jax.device_get(w), np.float32)
    K, Cin, Cout = w.shape
    assert L % 2 == 0
    G = np.zeros((L * Cin, L * Cout), np.float32)
    half = (L // 2) * Cout
    for l in range(L):                                    # output position
        col0 = (l // 2) * Cout + (half if (l % 2) else 0)
        for k in range(K):                                # kernel tap
            p = l + k - 1                                 # input position (padding=1)
            if 0 <= p < L:
                G[p * Cin:(p + 1) * Cin, col0:col0 + Cout] = w[k]
    return jnp.asarray(G)


def cnn1d_kernel(x_ref, g1_ref, sb1_ref, g2_ref, sb2_ref, g3_ref, sb3_ref, out_ref):
    """One grid step = BB examples.  Everything stays in (BB, lanes) layout."""

    def layer(h, g_ref, sb_ref):
        # Conv1d(k=3, pad=1) as a banded matmul (columns ordered [even pos | odd pos]).
        z = jnp.dot(h, g_ref[...], preferred_element_type=jnp.float32)
        # Folded BatchNorm (+ conv bias) and ReLU, per-channel scale/bias tiled over positions.
        z = jnp.maximum(z * sb_ref[0:1, :] + sb_ref[1:2, :], 0.0)
        # MaxPool1d(kernel_size=2): aligned elementwise max of the two column halves.
        half = z.shape[-1] // 2
        return jnp.maximum(z[:, :half], z[:, half:])

    p1 = layer(x_ref[...], g1_ref, sb1_ref)   # (BB, 16*32 = 512)
    p2 = layer(p1, g2_ref, sb2_ref)           # (BB,  8*64 = 512)
    p3 = layer(p2, g3_ref, sb3_ref)           # (BB,  4*64 = 256)

    # AdaptiveAvgPool1d(1) + view(-1, 64): mean over the 4 remaining positions.
    out_ref[...] = 0.25 * (p3[:, 0:C3] + p3[:, C3:2 * C3]
                           + p3[:, 2 * C3:3 * C3] + p3[:, 3 * C3:4 * C3])


def cnn1d_forward(x_ncl, params, block_b=256):
    """x_ncl: (B, 1, L0) float32, PyTorch NCL layout. Returns (B, 64)."""
    w1, sb1, w2, sb2, w3, sb3 = params
    B = x_ncl.shape[0]
    assert x_ncl.shape[1:] == (1, L0)
    x = x_ncl.reshape(B, L0).astype(jnp.float32)          # squeeze the Cin=1 dim

    # Batch tile: >= 64 recommended on v6e/v7x, >= 32 on v5e; clamp for tiny demo batches.
    bb = _round_up(min(block_b, _round_up(B, 8)), 8)
    b_pad = _round_up(B, bb)
    if b_pad != B:
        x = jnp.pad(x, ((0, b_pad - B), (0, 0)))

    # Banded conv(+pool-ready) matrices and per-lane folded BN scale/bias vectors.
    g1 = _conv_pool_matrix(w1, L0)                        # (32,   1024)
    g2 = _conv_pool_matrix(w2, L0 // 2)                   # (512,  1024)
    g3 = _conv_pool_matrix(w3, L0 // 4)                   # (512,   512)
    sb1_t = jnp.tile(sb1, (1, L0))                        # (2, 1024)
    sb2_t = jnp.tile(sb2, (1, L0 // 2))                   # (2, 1024)
    sb3_t = jnp.tile(sb3, (1, L0 // 4))                   # (2,  512)

    def full_spec(a):
        return pl.BlockSpec(a.shape, lambda i, _nd=a.ndim: (0,) * _nd)

    out = pl.pallas_call(
        cnn1d_kernel,
        out_shape=jax.ShapeDtypeStruct((b_pad, C3), jnp.float32),
        grid_spec=pltpu.PrefetchScalarGridSpec(
            num_scalar_prefetch=0,
            grid=(b_pad // bb,),
            in_specs=[
                pl.BlockSpec((bb, L0), lambda i: (i, 0)),  # per-block batch tile of the input
                full_spec(g1), full_spec(sb1_t),
                full_spec(g2), full_spec(sb2_t),
                full_spec(g3), full_spec(sb3_t),
            ],
            out_specs=pl.BlockSpec((bb, C3), lambda i: (i, 0)),
        ),
        compiler_params=pltpu.CompilerParams(
            dimension_semantics=("parallel",),             # TC-sharding on v7x; inert on v5e/v6e
            vmem_limit_bytes=32 * 1024 * 1024,             # ~10 MiB needed; safe on all gens
        ),
    )(x, g1, sb1_t, g2, sb2_t, g3, sb3_t)
    return out[:B]                                         # drop batch padding -> (B, 64)


def make_params(key):
    """Deterministic synthetic parameters; conv bias + BatchNorm folded to (scale, bias)."""
    ks = jax.random.split(key, 6)

    def conv_w(k, cin, cout):
        # PyTorch Conv1d weight is (cout, cin, 3); stored here as (3, cin, cout).
        return jax.random.normal(k, (3, cin, cout), jnp.float32) * 0.1

    def fold_bn(k, cout):
        conv_b = jax.random.normal(k, (cout,), jnp.float32) * 0.05
        gamma = jnp.ones((cout,), jnp.float32)             # BN default init
        beta = jnp.zeros((cout,), jnp.float32)
        running_mean = jnp.zeros((cout,), jnp.float32)
        running_var = jnp.ones((cout,), jnp.float32)
        eps = 1e-5
        scale = gamma / jnp.sqrt(running_var + eps)
        bias = (conv_b - running_mean) * scale + beta
        return jnp.stack([scale, bias], axis=0)            # (2, cout)

    # TODO(synk): BatchNorm1d is reproduced in inference mode (running stats); train-mode
    # batch statistics are not computed here.
    w1, sb1 = conv_w(ks[0], 1, C1), fold_bn(ks[1], C1)
    w2, sb2 = conv_w(ks[2], C1, C2), fold_bn(ks[3], C2)
    w3, sb3 = conv_w(ks[4], C2, C3), fold_bn(ks[5], C3)
    return (w1, sb1, w2, sb2, w3, sb3)


def reference_forward(x_ncl, params):
    """Pure-JAX reference with identical semantics (for correctness check)."""
    w1, sb1, w2, sb2, w3, sb3 = params
    x = jnp.transpose(x_ncl, (0, 2, 1)).astype(jnp.float32)        # (B, L, Cin)

    def layer(x, w, sb):
        B, L, Cin = x.shape
        xp = jnp.pad(x, ((0, 0), (1, 1), (0, 0)))
        y = sum(jnp.einsum('blc,cd->bld', xp[:, k:k + L, :], w[k]) for k in range(3))
        y = jnp.maximum(y * sb[0] + sb[1], 0.0)
        return y.reshape(B, L // 2, 2, -1).max(axis=2)

    x = layer(x, w1, sb1)
    x = layer(x, w2, sb2)
    x = layer(x, w3, sb3)
    return x.mean(axis=1)                                          # (B, 64)


if __name__ == "__main__":
    key = jax.random.PRNGKey(0)
    k_x, k_p = jax.random.split(key)
    params = make_params(k_p)

    # Small demo batch (single grid step).
    B = 2
    x = jax.random.normal(k_x, (B, 1, L0), jnp.float32)            # PyTorch NCL input
    out = jax.block_until_ready(cnn1d_forward(x, params))
    ref = reference_forward(x, params)
    np.testing.assert_allclose(np.asarray(out), np.asarray(ref), rtol=1e-4, atol=1e-4)
    assert out.shape == (B, 64)

    # Larger batch exercising multiple grid steps + batch padding.
    B2 = 130
    x2 = jax.random.normal(k_x, (B2, 1, L0), jnp.float32)
    out2 = jax.block_until_ready(cnn1d_forward(x2, params, block_b=64))
    ref2 = reference_forward(x2, params)
    np.testing.assert_allclose(np.asarray(out2), np.asarray(ref2), rtol=1e-4, atol=1e-4)
    assert out2.shape == (B2, 64)

    print("KERNEL_OK")
</pallas_src>

<mosaic_0001>
module attributes {stable_mosaic.version = 11 : i64} {
  func.func @cnn1d_kernel(%arg0: i32, %arg1: memref<8x32xf32, #tpu.memory_space<vmem>>, %arg2: memref<32x1024xf32, #tpu.memory_space<vmem>>, %arg3: memref<2x1024xf32, #tpu.memory_space<vmem>>, %arg4: memref<512x1024xf32, #tpu.memory_space<vmem>>, %arg5: memref<2x1024xf32, #tpu.memory_space<vmem>>, %arg6: memref<512x512xf32, #tpu.memory_space<vmem>>, %arg7: memref<2x512xf32, #tpu.memory_space<vmem>>, %arg8: memref<8x64xf32, #tpu.memory_space<vmem>>) attributes {dimension_semantics = [#tpu.dimension_semantics<parallel>], iteration_bounds = array<i64: 1>, scalar_prefetch = 0 : i64, scratch_operands = 0 : i64, tpu.core_type = #tpu.core_type<tc>, window_params = [{transform_indices = @transform_0, window_bounds = array<i64: 8, 32>}, {pipeline_mode = #tpu.pipeline_mode<synchronous>, transform_indices = @transform_1, window_bounds = array<i64: 32, 1024>}, {pipeline_mode = #tpu.pipeline_mode<synchronous>, transform_indices = @transform_2, window_bounds = array<i64: 2, 1024>}, {pipeline_mode = #tpu.pipeline_mode<synchronous>, transform_indices = @transform_3, window_bounds = array<i64: 512, 1024>}, {pipeline_mode = #tpu.pipeline_mode<synchronous>, transform_indices = @transform_4, window_bounds = array<i64: 2, 1024>}, {pipeline_mode = #tpu.pipeline_mode<synchronous>, transform_indices = @transform_5, window_bounds = array<i64: 512, 512>}, {pipeline_mode = #tpu.pipeline_mode<synchronous>, transform_indices = @transform_6, window_bounds = array<i64: 2, 512>}, {transform_indices = @transform_7, window_bounds = array<i64: 8, 64>}]} {
    %c0 = arith.constant 0 : index
    %c0_0 = arith.constant 0 : index
    %0 = vector.load %arg1[%c0, %c0_0] : memref<8x32xf32, #tpu.memory_space<vmem>>, vector<8x32xf32>
    %c0_1 = arith.constant 0 : index
    %c0_2 = arith.constant 0 : index
    %1 = vector.load %arg2[%c0_1, %c0_2] : memref<32x1024xf32, #tpu.memory_space<vmem>>, vector<32x1024xf32>
    %cst = arith.constant dense<0.000000e+00> : vector<8x1024xf32>
    %2 = tpu.matmul %0, %1, %cst {dimension_numbers = #tpu.dot_dimension_numbers<[1], [0], [0], [1], [0, 0, 1, 1], [], []>} : vector<8x32xf32>, vector<32x1024xf32>, vector<8x1024xf32> -> vector<8x1024xf32>
    %c0_3 = arith.constant 0 : index
    %c0_4 = arith.constant 0 : index
    %3 = vector.load %arg3[%c0_3, %c0_4] : memref<2x1024xf32, #tpu.memory_space<vmem>>, vector<1x1024xf32>
    %4 = vector.broadcast %3 : vector<1x1024xf32> to vector<8x1024xf32>
    %5 = arith.mulf %2, %4 : vector<8x1024xf32>
    %c1 = arith.constant 1 : index
    %c0_5 = arith.constant 0 : index
    %6 = vector.load %arg3[%c1, %c0_5] : memref<2x1024xf32, #tpu.memory_space<vmem>>, vector<1x1024xf32>
    %7 = vector.broadcast %6 : vector<1x1024xf32> to vector<8x1024xf32>
    %8 = arith.addf %5, %7 : vector<8x1024xf32>
    %cst_6 = arith.constant 0.000000e+00 : f32
    %9 = vector.broadcast %cst_6 : f32 to vector<8x1024xf32>
    %10 = arith.maximumf %8, %9 : vector<8x1024xf32>
    %11 = vector.extract_strided_slice %10 {offsets = [0, 0], sizes = [8, 512], strides = [1, 1]} : vector<8x1024xf32> to vector<8x512xf32>
    %12 = vector.extract_strided_slice %10 {offsets = [0, 512], sizes = [8, 512], strides = [1, 1]} : vector<8x1024xf32> to vector<8x512xf32>
    %13 = arith.maximumf %11, %12 : vector<8x512xf32>
    %c0_7 = arith.constant 0 : index
    %c0_8 = arith.constant 0 : index
    %14 = vector.load %arg4[%c0_7, %c0_8] : memref<512x1024xf32, #tpu.memory_space<vmem>>, vector<512x1024xf32>
    %cst_9 = arith.constant dense<0.000000e+00> : vector<8x1024xf32>
    %15 = tpu.matmul %13, %14, %cst_9 {dimension_numbers = #tpu.dot_dimension_numbers<[1], [0], [0], [1], [0, 0, 1, 1], [], []>} : vector<8x512xf32>, vector<512x1024xf32>, vector<8x1024xf32> -> vector<8x1024xf32>
    %c0_10 = arith.constant 0 : index
    %c0_11 = arith.constant 0 : index
    %16 = vector.load %arg5[%c0_10, %c0_11] : memref<2x1024xf32, #tpu.memory_space<vmem>>, vector<1x1024xf32>
    %17 = vector.broadcast %16 : vector<1x1024xf32> to vector<8x1024xf32>
    %18 = arith.mulf %15, %17 : vector<8x1024xf32>
    %c1_12 = arith.constant 1 : index
    %c0_13 = arith.constant 0 : index
    %19 = vector.load %arg5[%c1_12, %c0_13] : memref<2x1024xf32, #tpu.memory_space<vmem>>, vector<1x1024xf32>
    %20 = vector.broadcast %19 : vector<1x1024xf32> to vector<8x1024xf32>
    %21 = arith.addf %18, %20 : vector<8x1024xf32>
    %cst_14 = arith.constant 0.000000e+00 : f32
    %22 = vector.broadcast %cst_14 : f32 to vector<8x1024xf32>
    %23 = arith.maximumf %21, %22 : vector<8x1024xf32>
    %24 = vector.extract_strided_slice %23 {offsets = [0, 0], sizes = [8, 512], strides = [1, 1]} : vector<8x1024xf32> to vector<8x512xf32>
    %25 = vector.extract_strided_slice %23 {offsets = [0, 512], sizes = [8, 512], strides = [1, 1]} : vector<8x1024xf32> to vector<8x512xf32>
    %26 = arith.maximumf %24, %25 : vector<8x512xf32>
    %c0_15 = arith.constant 0 : index
    %c0_16 = arith.constant 0 : index
    %27 = vector.load %arg6[%c0_15, %c0_16] : memref<512x512xf32, #tpu.memory_space<vmem>>, vector<512x512xf32>
    %cst_17 = arith.constant dense<0.000000e+00> : vector<8x512xf32>
    %28 = tpu.matmul %26, %27, %cst_17 {dimension_numbers = #tpu.dot_dimension_numbers<[1], [0], [0], [1], [0, 0, 1, 1], [], []>} : vector<8x512xf32>, vector<512x512xf32>, vector<8x512xf32> -> vector<8x512xf32>
    %c0_18 = arith.constant 0 : index
    %c0_19 = arith.constant 0 : index
    %29 = vector.load %arg7[%c0_18, %c0_19] : memref<2x512xf32, #tpu.memory_space<vmem>>, vector<1x512xf32>
    %30 = vector.broadcast %29 : vector<1x512xf32> to vector<8x512xf32>
    %31 = arith.mulf %28, %30 : vector<8x512xf32>
    %c1_20 = arith.constant 1 : index
    %c0_21 = arith.constant 0 : index
    %32 = vector.load %arg7[%c1_20, %c0_21] : memref<2x512xf32, #tpu.memory_space<vmem>>, vector<1x512xf32>
    %33 = vector.broadcast %32 : vector<1x512xf32> to vector<8x512xf32>
    %34 = arith.addf %31, %33 : vector<8x512xf32>
    %cst_22 = arith.constant 0.000000e+00 : f32
    %35 = vector.broadcast %cst_22 : f32 to vector<8x512xf32>
    %36 = arith.maximumf %34, %35 : vector<8x512xf32>
    %37 = vector.extract_strided_slice %36 {offsets = [0, 0], sizes = [8, 256], strides = [1, 1]} : vector<8x512xf32> to vector<8x256xf32>
    %38 = vector.extract_strided_slice %36 {offsets = [0, 256], sizes = [8, 256], strides = [1, 1]} : vector<8x512xf32> to vector<8x256xf32>
    %39 = arith.maximumf %37, %38 : vector<8x256xf32>
    %40 = vector.extract_strided_slice %39 {offsets = [0, 0], sizes = [8, 64], strides = [1, 1]} : vector<8x256xf32> to vector<8x64xf32>
    %41 = vector.extract_strided_slice %39 {offsets = [0, 64], sizes = [8, 64], strides = [1, 1]} : vector<8x256xf32> to vector<8x64xf32>
    %42 = arith.addf %40, %41 : vector<8x64xf32>
    %43 = vector.extract_strided_slice %39 {offsets = [0, 128], sizes = [8, 64], strides = [1, 1]} : vector<8x256xf32> to vector<8x64xf32>
    %44 = arith.addf %42, %43 : vector<8x64xf32>
    %45 = vector.extract_strided_slice %39 {offsets = [0, 192], sizes = [8, 64], strides = [1, 1]} : vector<8x256xf32> to vector<8x64xf32>
    %46 = arith.addf %44, %45 : vector<8x64xf32>
    %cst_23 = arith.constant 2.500000e-01 : f32
    %47 = vector.broadcast %cst_23 : f32 to vector<8x64xf32>
    %48 = arith.mulf %47, %46 : vector<8x64xf32>
    %c0_24 = arith.constant 0 : index
    %c0_25 = arith.constant 0 : index
    %49 = vector.load %arg8[%c0_24, %c0_25] : memref<8x64xf32, #tpu.memory_space<vmem>>, vector<8x64xf32>
    tpu.vector_store %arg8[%c0_24, %c0_25], %48 {strides = array<i32>} : memref<8x64xf32, #tpu.memory_space<vmem>>, vector<8x64xf32>,
    return
  }
  func.func @transform_0(%arg0: i32) -> (i32, i32) {
    %c0_i32 = arith.constant 0 : i32
    %c0_i32_0 = arith.constant 0 : i32
    return %arg0, %c0_i32 : i32, i32
  }
  func.func @transform_1(%arg0: i32) -> (i32, i32) {
    %c0_i32 = arith.constant 0 : i32
    %c0_i32_0 = arith.constant 0 : i32
    %c0_i32_1 = arith.constant 0 : i32
    return %c0_i32, %c0_i32_0 : i32, i32
  }
  func.func @transform_2(%arg0: i32) -> (i32, i32) {
    %c0_i32 = arith.constant 0 : i32
    %c0_i32_0 = arith.constant 0 : i32
    %c0_i32_1 = arith.constant 0 : i32
    return %c0_i32, %c0_i32_0 : i32, i32
  }
  func.func @transform_3(%arg0: i32) -> (i32, i32) {
    %c0_i32 = arith.constant 0 : i32
    %c0_i32_0 = arith.constant 0 : i32
    %c0_i32_1 = arith.constant 0 : i32
    return %c0_i32, %c0_i32_0 : i32, i32
  }
  func.func @transform_4(%arg0: i32) -> (i32, i32) {
    %c0_i32 = arith.constant 0 : i32
    %c0_i32_0 = arith.constant 0 : i32
    %c0_i32_1 = arith.constant 0 : i32
    return %c0_i32, %c0_i32_0 : i32, i32
  }
  func.func @transform_5(%arg0: i32) -> (i32, i32) {
    %c0_i32 = arith.constant 0 : i32
    %c0_i32_0 = arith.constant 0 : i32
    %c0_i32_1 = arith.constant 0 : i32
    return %c0_i32, %c0_i32_0 : i32, i32
  }
  func.func @transform_6(%arg0: i32) -> (i32, i32) {
    %c0_i32 = arith.constant 0 : i32
    %c0_i32_0 = arith.constant 0 : i32
    %c0_i32_1 = arith.constant 0 : i32
    return %c0_i32, %c0_i32_0 : i32, i32
  }
  func.func @transform_7(%arg0: i32) -> (i32, i32) {
    %c0_i32 = arith.constant 0 : i32
    %c0_i32_0 = arith.constant 0 : i32
    return %arg0, %c0_i32 : i32, i32
  }
}

</mosaic_0001>

<llo_original>
// kernel: tpu_custom_call.1
$region0: #{tpu_custom_call.1}
  #allocation0 [shape = 'u32[]', space=smem, size = 0x4, offset = 0x4, fixed_abs, tag = 'smem constant byte address 0x4 - core index']
  #allocation1 [shape = 'u32[144,128]{1,0:T(1,128)}', space=vmem, size = 0x12000, scoped, tag = 'internal scratch']
  %s0 = inlined_call_operand.hbm [shape: f32[8,32], index: 0, kind: input, shape index: {}]
  %s1 = inlined_call_operand.hbm [shape: f32[32,1024], index: 1, kind: input, shape index: {}]
  %s2 = inlined_call_operand.hbm [shape: f32[2,1024], index: 2, kind: input, shape index: {}]
  %s3 = inlined_call_operand.hbm [shape: f32[512,1024], index: 3, kind: input, shape index: {}]
  %s4 = inlined_call_operand.hbm [shape: f32[2,1024], index: 4, kind: input, shape index: {}]
  %s5 = inlined_call_operand.hbm [shape: f32[512,512], index: 5, kind: input, shape index: {}]
  %s6 = inlined_call_operand.hbm [shape: f32[2,512], index: 6, kind: input, shape index: {}]
  %s7 = inlined_call_operand.hbm [shape: f32[8,64], index: 7, kind: output, shape index: {}]
  %s8 = sld [smem:[#allocation0]]
  $region66: #{tpu_custom_call.1} parent=0
    _
  %s10 = ssub.s32 1, %s8
  %s11 = scalar_select 0, %s10, %s8
  $region1: #{tpu_custom_call.1} parent=0
    #allocation2 [shape = 'u8[4096]{0}', space=vmem, size = 0x1000, scoped, tag = 'input window, operand 0, single buffered']
    #allocation3 [shape = 's32[1]{0}', space=sflag, size = 0x4, scoped, tag = 'scoped memory for tpu_custom_call.1']
    #allocation4 [shape = 's32[1]{0}', space=sflag, size = 0x4, scoped, tag = 'scoped memory for tpu_custom_call.1']
    #allocation5 [shape = 'u8[131072]{0}', space=vmem, size = 0x20000, scoped, tag = 'input window, operand 1, single buffered']
    #allocation6 [shape = 's32[1]{0}', space=sflag, size = 0x4, scoped, tag = 'scoped memory for tpu_custom_call.1']
    #allocation7 [shape = 'u8[8192]{0}', space=vmem, size = 0x2000, scoped, tag = 'input window, operand 2, single buffered']
    #allocation8 [shape = 'u8[2097152]{0}', space=vmem, size = 0x200000, scoped, tag = 'input window, operand 3, single buffered']
    #allocation9 [shape = 's32[1]{0}', space=sflag, size = 0x4, scoped, tag = 'scoped memory for tpu_custom_call.1']
    #allocation10 [shape = 'u8[8192]{0}', space=vmem, size = 0x2000, scoped, tag = 'input window, operand 4, single buffered']
    #allocation11 [shape = 'u8[1048576]{0}', space=vmem, size = 0x100000, scoped, tag = 'input window, operand 5, single buffered']
    #allocation12 [shape = 's32[1]{0}', space=sflag, size = 0x4, scoped, tag = 'scoped memory for tpu_custom_call.1']
    #allocation13 [shape = 'u8[4096]{0}', space=vmem, size = 0x1000, scoped, tag = 'input window, operand 6, single buffered']
    #allocation14 [shape = 'u8[4096]{0}', space=vmem, size = 0x1000, scoped, tag = 'output window, operand 0, single buffered']
    %12 = vsyncpa [#allocation3], 0
    %13 = vsyncpa [#allocation6], 0
    %14 = vsyncpa [#allocation9], 0
    %15 = vsyncpa [#allocation12], 0
    %16 = vsyncpa [#allocation4], 0
    // Predicated region
    $region2: #{tpu_custom_call.1} parent=1 // pred_check
      _
    $region3: #{tpu_custom_call.1} parent=1 // pred_check_branch
      %18 = sbr.rel (0) target = $region5
    $region4: #{tpu_custom_call.1} parent=1 // pred_region
      %s20 = ssub.s32 128, 128
      %21 = vsyncadd [#allocation3], %s20
      %s23 = sshll.u32 [#allocation2], 4
      %s24 = int_to_ptr.vmem [resolvable:$true] %s23
      %26 = dma.hbm_to_vmem [thread:$0]  %s0, 128, %s24, [#allocation3]
    $region5: #{tpu_custom_call.1} parent=1 // pred_fallthru
      _
    // Predicated region
    $region6: #{tpu_custom_call.1} parent=1 // pred_check
      _
    $region7: #{tpu_custom_call.1} parent=1 // pred_check_branch
      %28 = sbr.rel (0) target = $region9
    $region8: #{tpu_custom_call.1} parent=1 // pred_region
      %s30 = ssub.s32 4096, 4096
      %31 = vsyncadd [#allocation6], %s30
      %s32 = sshll.u32 [#allocation5], 4
      %s33 = int_to_ptr.vmem [resolvable:$true] %s32
      %38 = dma.hbm_to_vmem [thread:$0]  %s1, 4096, %s33, [#allocation6], 1024, 1024, 64
    $region9: #{tpu_custom_call.1} parent=1 // pred_fallthru
      _
    // Predicated region
    $region10: #{tpu_custom_call.1} parent=1 // pred_check
      _
    $region11: #{tpu_custom_call.1} parent=1 // pred_check_branch
      %40 = sbr.rel (0) target = $region13
    $region12: #{tpu_custom_call.1} parent=1 // pred_region
      %s42 = ssub.s32 256, 256
      %43 = vsyncadd [#allocation6], %s42
      %s45 = sshll.u32 [#allocation7], 4
      %s46 = int_to_ptr.vmem [resolvable:$true] %s45
      %48 = dma.hbm_to_vmem [thread:$0]  %s2, 256, %s46, [#allocation6]
    $region13: #{tpu_custom_call.1} parent=1 // pred_fallthru
      _
    // Predicated region
    $region14: #{tpu_custom_call.1} parent=1 // pred_check
      _
    $region15: #{tpu_custom_call.1} parent=1 // pred_check_branch
      %50 = sbr.rel (0) target = $region17
    $region16: #{tpu_custom_call.1} parent=1 // pred_region
      %s52 = ssub.s32 65536, 65536
      %53 = vsyncadd [#allocation9], %s52
      %s54 = sshll.u32 [#allocation8], 4
      %s55 = int_to_ptr.vmem [resolvable:$true] %s54
      %60 = dma.hbm_to_vmem [thread:$0]  %s3, 65536, %s55, [#allocation9], 1024, 1024, 64
    $region17: #{tpu_custom_call.1} parent=1 // pred_fallthru
      _
    // Predicated region
    $region18: #{tpu_custom_call.1} parent=1 // pred_check
      _
    $region19: #{tpu_custom_call.1} parent=1 // pred_check_branch
      %62 = sbr.rel (0) target = $region21
    $region20: #{tpu_custom_call.1} parent=1 // pred_region
      %s64 = ssub.s32 256, 256
      %65 = vsyncadd [#allocation9], %s64
      %s67 = sshll.u32 [#allocation10], 4
      %s68 = int_to_ptr.vmem [resolvable:$true] %s67
      %70 = dma.hbm_to_vmem [thread:$0]  %s4, 256, %s68, [#allocation9]
    $region21: #{tpu_custom_call.1} parent=1 // pred_fallthru
      _
    // Predicated region
    $region22: #{tpu_custom_call.1} parent=1 // pred_check
      _
    $region23: #{tpu_custom_call.1} parent=1 // pred_check_branch
      %72 = sbr.rel (0) target = $region25
    $region24: #{tpu_custom_call.1} parent=1 // pred_region
      %s74 = ssub.s32 32768, 32768
      %75 = vsyncadd [#allocation12], %s74
      %s76 = sshll.u32 [#allocation11], 4
      %s77 = int_to_ptr.vmem [resolvable:$true] %s76
      %82 = dma.hbm_to_vmem [thread:$0]  %s5, 32768, %s77, [#allocation12], 512, 512, 32
    $region25: #{tpu_custom_call.1} parent=1 // pred_fallthru
      _
    // Predicated region
    $region26: #{tpu_custom_call.1} parent=1 // pred_check
      _
    $region27: #{tpu_custom_call.1} parent=1 // pred_check_branch
      %84 = sbr.rel (0) target = $region29
    $region28: #{tpu_custom_call.1} parent=1 // pred_region
      %s86 = ssub.s32 128, 128
      %87 = vsyncadd [#allocation12], %s86
      %s89 = sshll.u32 [#allocation13], 4
      %s90 = int_to_ptr.vmem [resolvable:$true] %s89
      %92 = dma.hbm_to_vmem [thread:$0]  %s6, 128, %s90, [#allocation12]
    $region29: #{tpu_custom_call.1} parent=1 // pred_fallthru
      _
    // Predicated region
    $region30: #{tpu_custom_call.1} parent=1 // pred_check
      _
    $region31: #{tpu_custom_call.1} parent=1 // pred_check_branch
      %94 = sbr.rel (0) target = $region33
    $region32: #{tpu_custom_call.1} parent=1 // pred_region
      %95 = dma.done [#allocation3], 128
    $region33: #{tpu_custom_call.1} parent=1 // pred_fallthru
      _
    // Predicated region
    $region34: #{tpu_custom_call.1} parent=1 // pred_check
      _
    $region35: #{tpu_custom_call.1} parent=1 // pred_check_branch
      %97 = sbr.rel (0) target = $region37
    $region36: #{tpu_custom_call.1} parent=1 // pred_region
      %98 = dma.done [#allocation6], 4096
    $region37: #{tpu_custom_call.1} parent=1 // pred_fallthru
      _
    // Predicated region
    $region38: #{tpu_custom_call.1} parent=1 // pred_check
      _
    $region39: #{tpu_custom_call.1} parent=1 // pred_check_branch
      %100 = sbr.rel (0) target = $region41
    $region40: #{tpu_custom_call.1} parent=1 // pred_region
      %101 = dma.done [#allocation6], 256
    $region41: #{tpu_custom_call.1} parent=1 // pred_fallthru
      _
    // Predicated region
    $region42: #{tpu_custom_call.1} parent=1 // pred_check
      _
    $region43: #{tpu_custom_call.1} parent=1 // pred_check_branch
      %103 = sbr.rel (0) target = $region45
    $region44: #{tpu_custom_call.1} parent=1 // pred_region
      %104 = dma.done [#allocation9], 65536
    $region45: #{tpu_custom_call.1} parent=1 // pred_fallthru
      _
    // Predicated region
    $region46: #{tpu_custom_call.1} parent=1 // pred_check
      _
    $region47: #{tpu_custom_call.1} parent=1 // pred_check_branch
      %106 = sbr.rel (0) target = $region49
    $region48: #{tpu_custom_call.1} parent=1 // pred_region
      %107 = dma.done [#allocation9], 256
    $region49: #{tpu_custom_call.1} parent=1 // pred_fallthru
      _
    // Predicated region
    $region50: #{tpu_custom_call.1} parent=1 // pred_check
      _
    $region51: #{tpu_custom_call.1} parent=1 // pred_check_branch
      %109 = sbr.rel (0) target = $region53
    $region52: #{tpu_custom_call.1} parent=1 // pred_region
      %110 = dma.done [#allocation12], 32768
    $region53: #{tpu_custom_call.1} parent=1 // pred_fallthru
      _
    // Predicated region
    $region54: #{tpu_custom_call.1} parent=1 // pred_check
      _
    $region55: #{tpu_custom_call.1} parent=1 // pred_check_branch
      %112 = sbr.rel (0) target = $region57
    $region56: #{tpu_custom_call.1} parent=1 // pred_region
      %113 = dma.done [#allocation12], 128
    $region57: #{tpu_custom_call.1} parent=1 // pred_fallthru
      _
    %v114 = vld [vmem:[#allocation2] sm:$0xff]
    %v115 = vld [vmem:[#allocation5] sm:$0xff]
    %v116 = vld [vmem:[#allocation5 + $0x8] sm:$0xff]
    %v117 = vld [vmem:[#allocation5 + $0x10] sm:$0xff]
    %v118 = vld [vmem:[#allocation5 + $0x18] sm:$0xff]
    %v119 = vld [vmem:[#allocation5 + $0x20] sm:$0xff]
    %v120 = vld [vmem:[#allocation5 + $0x28] sm:$0xff]
    %v121 = vld [vmem:[#allocation5 + $0x30] sm:$0xff]
    %v122 = vld [vmem:[#allocation5 + $0x38] sm:$0xff]
    %v123 = vld [vmem:[#allocation5 + $0x40] sm:$0xff]
    %v124 = vld [vmem:[#allocation5 + $0x48] sm:$0xff]
    %v125 = vld [vmem:[#allocation5 + $0x50] sm:$0xff]
    %v126 = vld [vmem:[#allocation5 + $0x58] sm:$0xff]
    %v127 = vld [vmem:[#allocation5 + $0x60] sm:$0xff]
    %v128 = vld [vmem:[#allocation5 + $0x68] sm:$0xff]
    %v129 = vld [vmem:[#allocation5 + $0x70] sm:$0xff]
    %v130 = vld [vmem:[#allocation5 + $0x78] sm:$0xff]
    %v131 = vld [vmem:[#allocation5 + $0x80] sm:$0xff]
    %v132 = vld [vmem:[#allocation5 + $0x88] sm:$0xff]
    %v133 = vld [vmem:[#allocation5 + $0x90] sm:$0xff]
    %v134 = vld [vmem:[#allocation5 + $0x98] sm:$0xff]
    %v135 = vld [vmem:[#allocation5 + $0xa0] sm:$0xff]
    %v136 = vld [vmem:[#allocation5 + $0xa8] sm:$0xff]
    %v137 = vld [vmem:[#allocation5 + $0xb0] sm:$0xff]
    %v138 = vld [vmem:[#allocation5 + $0xb8] sm:$0xff]
    %v139 = vld [vmem:[#allocation5 + $0xc0] sm:$0xff]
    %v140 = vld [vmem:[#allocation5 + $0xc8] sm:$0xff]
    %v141 = vld [vmem:[#allocation5 + $0xd0] sm:$0xff]
    %v142 = vld [vmem:[#allocation5 + $0xd8] sm:$0xff]
    %v143 = vld [vmem:[#allocation5 + $0xe0] sm:$0xff]
    %v144 = vld [vmem:[#allocation5 + $0xe8] sm:$0xff]
    %v145 = vld [vmem:[#allocation5 + $0xf0] sm:$0xff]
    %v146 = vld [vmem:[#allocation5 + $0xf8] sm:$0xff]
    %vm147 = vcmask 261120
    %v149 = vsel %vm147, %v114, 0
    %151 = vmatprep.subr.mxu0 %v116
    %152 = vmatpush1.msra.mxu0 %v115
    %153 = vmatprep.subr.mxu0 %v124
    %154 = vmatpush1.msra.mxu0 %v123
    %155 = vmatprep.subr.mxu0 %v132
    %156 = vmatpush1.msra.mxu0 %v131
    %157 = vmatprep.subr.mxu0 %v140
    %158 = vmatpush1.msra.mxu0 %v139
    %159 = vmatprep.subr.mxu0 0.0
    %160 = vmatpush1.msra.mxu0 0.0
    %161 = vmatprep.subr.mxu0 0.0
    %162 = vmatpush1.msra.mxu0 0.0
    %163 = vmatprep.subr.mxu0 0.0
    %164 = vmatpush1.msra.mxu0 0.0
    %165 = vmatprep.subr.mxu0 0.0
    %166 = vmatpush1.msra.mxu0 0.0
    %167 = vmatprep.subr.mxu0 0.0
    %168 = vmatpush1.msra.mxu0 0.0
    %169 = vmatprep.subr.mxu0 0.0
    %170 = vmatpush1.msra.mxu0 0.0
    %171 = vmatprep.subr.mxu0 0.0
    %172 = vmatpush1.msra.mxu0 0.0
    %173 = vmatprep.subr.mxu0 0.0
    %174 = vmatpush1.msra.mxu0 0.0
    %175 = vmatprep.subr.mxu0 0.0
    %176 = vmatpush1.msra.mxu0 0.0
    %177 = vmatprep.subr.mxu0 0.0
    %178 = vmatpush1.msra.mxu0 0.0
    %179 = vmatprep.subr.mxu0 0.0
    %180 = vmatpush1.msra.mxu0 0.0
    %181 = vmatprep.subr.mxu0 0.0
    %182 = vmatpush1.msra.mxu0 0.0
    %183 = vmatprep.subr.mxu0 0.0
    %184 = vmatpush1.msra.mxu0 0.0
    %185 = vmatprep.subr.mxu0 0.0
    %186 = vmatpush1.msra.mxu0 0.0
    %187 = vmatprep.subr.mxu0 0.0
    %188 = vmatpush1.msra.mxu0 0.0
    %189 = vmatprep.subr.mxu0 0.0
    %190 = vmatpush1.msra.mxu0 0.0
    %191 = vmatprep.subr.mxu0 0.0
    %192 = vmatpush1.msra.mxu0 0.0
    %193 = vmatprep.subr.mxu0 0.0
    %194 = vmatpush1.msra.mxu0 0.0
    %195 = vmatprep.subr.mxu0 0.0
    %196 = vmatpush1.msra.mxu0 0.0
    %197 = vmatprep.subr.mxu0 0.0
    %198 = vmatpush1.msra.mxu0 0.0
    %199 = vmatprep.subr.mxu0 0.0
    %200 = vmatpush1.msra.mxu0 0.0
    %201 = vmatprep.subr.mxu0 0.0
    %202 = vmatpush1.msra.mxu0 0.0
    %203 = vmatprep.subr.mxu0 0.0
    %204 = vmatpush1.msra.mxu0 0.0
    %205 = vmatprep.subr.mxu0 0.0
    %206 = vmatpush1.msra.mxu0 0.0
    %207 = vmatprep.subr.mxu0 0.0
    %208 = vmatpush1.msra.mxu0 0.0
    %209 = vmatprep.subr.mxu0 0.0
    %210 = vmatpush1.msra.mxu0 0.0
    %211 = vmatprep.subr.mxu0 0.0
    %212 = vmatpush1.msra.mxu0 0.0
    %213 = vmatprep.subr.mxu0 0.0
    %214 = vmatpush1.msra.mxu0 0.0
    %215 = vmatprep.mubr.f32.mxu0 0.0
    %216 = vmatmul.mubr.f32.gmra.mrb[0].mxu0 %v149
    %v217 = vpop.f32.mrb[0].mxu0
    %v218 = vadd.f32 0.0, %v217
    %v219 = vpop.f32.mrb[0].mxu0
    %v220 = vadd.f32 0.0, %v219
    %221 = vdwg.mxu0
    %222 = vmatprep.subr.mxu0 %v118
    %223 = vmatpush1.msra.mxu0 %v117
    %224 = vmatprep.subr.mxu0 %v126
    %225 = vmatpush1.msra.mxu0 %v125
    %226 = vmatprep.subr.mxu0 %v134
    %227 = vmatpush1.msra.mxu0 %v133
    %228 = vmatprep.subr.mxu0 %v142
    %229 = vmatpush1.msra.mxu0 %v141
    %230 = vmatprep.subr.mxu0 0.0
    %231 = vmatpush1.msra.mxu0 0.0
    %232 = vmatprep.subr.mxu0 0.0
    %233 = vmatpush1.msra.mxu0 0.0
    %234 = vmatprep.subr.mxu0 0.0
    %235 = vmatpush1.msra.mxu0 0.0
    %236 = vmatprep.subr.mxu0 0.0
    %237 = vmatpush1.msra.mxu0 0.0
    %238 = vmatprep.subr.mxu0 0.0
    %239 = vmatpush1.msra.mxu0 0.0
    %240 = vmatprep.subr.mxu0 0.0
    %241 = vmatpush1.msra.mxu0 0.0
    %242 = vmatprep.subr.mxu0 0.0
    %243 = vmatpush1.msra.mxu0 0.0
    %244 = vmatprep.subr.mxu0 0.0
    %245 = vmatpush1.msra.mxu0 0.0
    %246 = vmatprep.subr.mxu0 0.0
    %247 = vmatpush1.msra.mxu0 0.0
    %248 = vmatprep.subr.mxu0 0.0
    %249 = vmatpush1.msra.mxu0 0.0
    %250 = vmatprep.subr.mxu0 0.0
    %251 = vmatpush1.msra.mxu0 0.0
    %252 = vmatprep.subr.mxu0 0.0
    %253 = vmatpush1.msra.mxu0 0.0
    %254 = vmatprep.subr.mxu0 0.0
    %255 = vmatpush1.msra.mxu0 0.0
    %256 = vmatprep.subr.mxu0 0.0
    %257 = vmatpush1.msra.mxu0 0.0
    %258 = vmatprep.subr.mxu0 0.0
    %259 = vmatpush1.msra.mxu0 0.0
    %260 = vmatprep.subr.mxu0 0.0
    %261 = vmatpush1.msra.mxu0 0.0
    %262 = vmatprep.subr.mxu0 0.0
    %263 = vmatpush1.msra.mxu0 0.0
    %264 = vmatprep.subr.mxu0 0.0
    %265 = vmatpush1.msra.mxu0 0.0
    %266 = vmatprep.subr.mxu0 0.0
    %267 = vmatpush1.msra.mxu0 0.0
    %268 = vmatprep.subr.mxu0 0.0
    %269 = vmatpush1.msra.mxu0 0.0
    %270 = vmatprep.subr.mxu0 0.0
    %271 = vmatpush1.msra.mxu0 0.0
    %272 = vmatprep.subr.mxu0 0.0
    %273 = vmatpush1.msra.mxu0 0.0
    %274 = vmatprep.subr.mxu0 0.0
    %275 = vmatpush1.msra.mxu0 0.0
    %276 = vmatprep.subr.mxu0 0.0
    %277 = vmatpush1.msra.mxu0 0.0
    %278 = vmatprep.subr.mxu0 0.0
    %279 = vmatpush1.msra.mxu0 0.0
    %280 = vmatprep.subr.mxu0 0.0
    %281 = vmatpush1.msra.mxu0 0.0
    %282 = vmatprep.subr.mxu0 0.0
    %283 = vmatpush1.msra.mxu0 0.0
    %284 = vmatprep.subr.mxu0 0.0
    %285 = vmatpush1.msra.mxu0 0.0
    %286 = vmatprep.mubr.f32.mxu0 0.0
    %287 = vmatmul.mubr.f32.gmra.mrb[0].mxu0 %v149
    %v288 = vpop.f32.mrb[0].mxu0
    %v289 = vadd.f32 0.0, %v288
    %v290 = vpop.f32.mrb[0].mxu0
    %v291 = vadd.f32 0.0, %v290
    %292 = vdwg.mxu0
    %293 = vmatprep.subr.mxu0 %v120
    %294 = vmatpush1.msra.mxu0 %v119
    %295 = vmatprep.subr.mxu0 %v128
    %296 = vmatpush1.msra.mxu0 %v127
    %297 = vmatprep.subr.mxu0 %v136
    %298 = vmatpush1.msra.mxu0 %v135
    %299 = vmatprep.subr.mxu0 %v144
    %300 = vmatpush1.msra.mxu0 %v143
    %301 = vmatprep.subr.mxu0 0.0
    %302 = vmatpush1.msra.mxu0 0.0
    %303 = vmatprep.subr.mxu0 0.0
    %304 = vmatpush1.msra.mxu0 0.0
    %305 = vmatprep.subr.mxu0 0.0
    %306 = vmatpush1.msra.mxu0 0.0
    %307 = vmatprep.subr.mxu0 0.0
    %308 = vmatpush1.msra.mxu0 0.0
    %309 = vmatprep.subr.mxu0 0.0
    %310 = vmatpush1.msra.mxu0 0.0
    %311 = vmatprep.subr.mxu0 0.0
    %312 = vmatpush1.msra.mxu0 0.0
    %313 = vmatprep.subr.mxu0 0.0
    %314 = vmatpush1.msra.mxu0 0.0
    %315 = vmatprep.subr.mxu0 0.0
    %316 = vmatpush1.msra.mxu0 0.0
    %317 = vmatprep.subr.mxu0 0.0
    %318 = vmatpush1.msra.mxu0 0.0
    %319 = vmatprep.subr.mxu0 0.0
    %320 = vmatpush1.msra.mxu0 0.0
    %321 = vmatprep.subr.mxu0 0.0
    %322 = vmatpush1.msra.mxu0 0.0
    %323 = vmatprep.subr.mxu0 0.0
    %324 = vmatpush1.msra.mxu0 0.0
    %325 = vmatprep.subr.mxu0 0.0
    %326 = vmatpush1.msra.mxu0 0.0
    %327 = vmatprep.subr.mxu0 0.0
    %328 = vmatpush1.msra.mxu0 0.0
    %329 = vmatprep.subr.mxu0 0.0
    %330 = vmatpush1.msra.mxu0 0.0
    %331 = vmatprep.subr.mxu0 0.0
    %332 = vmatpush1.msra.mxu0 0.0
    %333 = vmatprep.subr.mxu0 0.0
    %334 = vmatpush1.msra.mxu0 0.0
    %335 = vmatprep.subr.mxu0 0.0
    %336 = vmatpush1.msra.mxu0 0.0
    %337 = vmatprep.subr.mxu0 0.0
    %338 = vmatpush1.msra.mxu0 0.0
    %339 = vmatprep.subr.mxu0 0.0
    %340 = vmatpush1.msra.mxu0 0.0
    %341 = vmatprep.subr.mxu0 0.0
    %342 = vmatpush1.msra.mxu0 0.0
    %343 = vmatprep.subr.mxu0 0.0
    %344 = vmatpush1.msra.mxu0 0.0
    %345 = vmatprep.subr.mxu0 0.0
    %346 = vmatpush1.msra.mxu0 0.0
    %347 = vmatprep.subr.mxu0 0.0
    %348 = vmatpush1.msra.mxu0 0.0
    %349 = vmatprep.subr.mxu0 0.0
    %350 = vmatpush1.msra.mxu0 0.0
    %351 = vmatprep.subr.mxu0 0.0
    %352 = vmatpush1.msra.mxu0 0.0
    %353 = vmatprep.subr.mxu0 0.0
    %354 = vmatpush1.msra.mxu0 0.0
    %355 = vmatprep.subr.mxu0 0.0
    %356 = vmatpush1.msra.mxu0 0.0
    %357 = vmatprep.mubr.f32.mxu0 0.0
    %358 = vmatmul.mubr.f32.gmra.mrb[0].mxu0 %v149
    %v359 = vpop.f32.mrb[0].mxu0
    %v360 = vadd.f32 0.0, %v359
    %v361 = vpop.f32.mrb[0].mxu0
    %v362 = vadd.f32 0.0, %v361
    %363 = vdwg.mxu0
    %364 = vmatprep.subr.mxu0 %v122
    %365 = vmatpush1.msra.mxu0 %v121
    %366 = vmatprep.subr.mxu0 %v130
    %367 = vmatpush1.msra.mxu0 %v129
    %368 = vmatprep.subr.mxu0 %v138
    %369 = vmatpush1.msra.mxu0 %v137
    %370 = vmatprep.subr.mxu0 %v146
    %371 = vmatpush1.msra.mxu0 %v145
    %372 = vmatprep.subr.mxu0 0.0
    %373 = vmatpush1.msra.mxu0 0.0
    %374 = vmatprep.subr.mxu0 0.0
    %375 = vmatpush1.msra.mxu0 0.0
    %376 = vmatprep.subr.mxu0 0.0
    %377 = vmatpush1.msra.mxu0 0.0
    %378 = vmatprep.subr.mxu0 0.0
    %379 = vmatpush1.msra.mxu0 0.0
    %380 = vmatprep.subr.mxu0 0.0
    %381 = vmatpush1.msra.mxu0 0.0
    %382 = vmatprep.subr.mxu0 0.0
    %383 = vmatpush1.msra.mxu0 0.0
    %384 = vmatprep.subr.mxu0 0.0
    %385 = vmatpush1.msra.mxu0 0.0
    %386 = vmatprep.subr.mxu0 0.0
    %387 = vmatpush1.msra.mxu0 0.0
    %388 = vmatprep.subr.mxu0 0.0
    %389 = vmatpush1.msra.mxu0 0.0
    %390 = vmatprep.subr.mxu0 0.0
    %391 = vmatpush1.msra.mxu0 0.0
    %392 = vmatprep.subr.mxu0 0.0
    %393 = vmatpush1.msra.mxu0 0.0
    %394 = vmatprep.subr.mxu0 0.0
    %395 = vmatpush1.msra.mxu0 0.0
    %396 = vmatprep.subr.mxu0 0.0
    %397 = vmatpush1.msra.mxu0 0.0
    %398 = vmatprep.subr.mxu0 0.0
    %399 = vmatpush1.msra.mxu0 0.0
    %400 = vmatprep.subr.mxu0 0.0
    %401 = vmatpush1.msra.mxu0 0.0
    %402 = vmatprep.subr.mxu0 0.0
    %403 = vmatpush1.msra.mxu0 0.0
    %404 = vmatprep.subr.mxu0 0.0
    %405 = vmatpush1.msra.mxu0 0.0
    %406 = vmatprep.subr.mxu0 0.0
    %407 = vmatpush1.msra.mxu0 0.0
    %408 = vmatprep.subr.mxu0 0.0
    %409 = vmatpush1.msra.mxu0 0.0
    %410 = vmatprep.subr.mxu0 0.0
    %411 = vmatpush1.msra.mxu0 0.0
    %412 = vmatprep.subr.mxu0 0.0
    %413 = vmatpush1.msra.mxu0 0.0
    %414 = vmatprep.subr.mxu0 0.0
    %415 = vmatpush1.msra.mxu0 0.0
    %416 = vmatprep.subr.mxu0 0.0
    %417 = vmatpush1.msra.mxu0 0.0
    %418 = vmatprep.subr.mxu0 0.0
    %419 = vmatpush1.msra.mxu0 0.0
    %420 = vmatprep.subr.mxu0 0.0
    %421 = vmatpush1.msra.mxu0 0.0
    %422 = vmatprep.subr.mxu0 0.0
    %423 = vmatpush1.msra.mxu0 0.0
    %424 = vmatprep.subr.mxu0 0.0
    %425 = vmatpush1.msra.mxu0 0.0
    %426 = vmatprep.subr.mxu0 0.0
    %427 = vmatpush1.msra.mxu0 0.0
    %428 = vmatprep.mubr.f32.mxu0 0.0
    %429 = vmatmul.mubr.f32.gmra.mrb[0].mxu0 %v149
    %v430 = vpop.f32.mrb[0].mxu0
    %v431 = vadd.f32 0.0, %v430
    %v432 = vpop.f32.mrb[0].mxu0
    %v433 = vadd.f32 0.0, %v432
    %434 = vdwg.mxu0
    %v435 = vld [vmem:[#allocation7] ss:$2 sm:$0xff]
    %v437 = vlaneseq
    %v438 = vshrl.u32 %v437, 7
    %v439 = vsub.s32 0, %v438
    %v440 = vrot.slane %v435, %v439
    %v441 = vlaneseq
    %v442 = vshrl.u32 %v441, 7
    %v443 = vsub.s32 1, %v442
    %v444 = vrot.slane %v435, %v443
    %v445 = vlaneseq
    %v446 = vshrl.u32 %v445, 7
    %v447 = vsub.s32 2, %v446
    %v448 = vrot.slane %v435, %v447
    %v449 = vlaneseq
    %v450 = vshrl.u32 %v449, 7
    %v451 = vsub.s32 3, %v450
    %v452 = vrot.slane %v435, %v451
    %v453 = vlaneseq
    %v454 = vshrl.u32 %v453, 7
    %v455 = vsub.s32 4, %v454
    %v456 = vrot.slane %v435, %v455
    %v457 = vlaneseq
    %v458 = vshrl.u32 %v457, 7
    %v459 = vsub.s32 5, %v458
    %v460 = vrot.slane %v435, %v459
    %v461 = vlaneseq
    %v462 = vshrl.u32 %v461, 7
    %v463 = vsub.s32 6, %v462
    %v464 = vrot.slane %v435, %v463
    %v465 = vlaneseq
    %v466 = vshrl.u32 %v465, 7
    %v467 = vsub.s32 7, %v466
    %v468 = vrot.slane %v435, %v467
    %v477 = vmul.f32 %v218, %v440
    %v478 = vmul.f32 %v220, %v444
    %v479 = vmul.f32 %v289, %v448
    %v480 = vmul.f32 %v291, %v452
    %v481 = vmul.f32 %v360, %v456
    %v482 = vmul.f32 %v362, %v460
    %v483 = vmul.f32 %v431, %v464
    %v484 = vmul.f32 %v433, %v468
    %s485 = scalar_lea.vmem [#allocation7], 1
    %v486 = vld [vmem:[%s485] ss:$2 sm:$0xff]
    %v488 = vlaneseq
    %v489 = vshrl.u32 %v488, 7
    %v490 = vsub.s32 0, %v489
    %v491 = vrot.slane %v486, %v490
    %v492 = vlaneseq
    %v493 = vshrl.u32 %v492, 7
    %v494 = vsub.s32 1, %v493
    %v495 = vrot.slane %v486, %v494
    %v496 = vlaneseq
    %v497 = vshrl.u32 %v496, 7
    %v498 = vsub.s32 2, %v497
    %v499 = vrot.slane %v486, %v498
    %v500 = vlaneseq
    %v501 = vshrl.u32 %v500, 7
    %v502 = vsub.s32 3, %v501
    %v503 = vrot.slane %v486, %v502
    %v504 = vlaneseq
    %v505 = vshrl.u32 %v504, 7
    %v506 = vsub.s32 4, %v505
    %v507 = vrot.slane %v486, %v506
    %v508 = vlaneseq
    %v509 = vshrl.u32 %v508, 7
    %v510 = vsub.s32 5, %v509
    %v511 = vrot.slane %v486, %v510
    %v512 = vlaneseq
    %v513 = vshrl.u32 %v512, 7
    %v514 = vsub.s32 6, %v513
    %v515 = vrot.slane %v486, %v514
    %v516 = vlaneseq
    %v517 = vshrl.u32 %v516, 7
    %v518 = vsub.s32 7, %v517
    %v519 = vrot.slane %v486, %v518
    %v528 = vadd.f32 %v477, %v491
    %v529 = vadd.f32 %v478, %v495
    %v530 = vadd.f32 %v479, %v499
    %v531 = vadd.f32 %v480, %v503
    %v532 = vadd.f32 %v481, %v507
    %v533 = vadd.f32 %v482, %v511
    %v534 = vadd.f32 %v483, %v515
    %v535 = vadd.f32 %v484, %v519
    %v536 = vmax.f32 %v528, 0.0
    %v537 = vmax.f32 %v529, 0.0
    %v538 = vmax.f32 %v530, 0.0
    %v539 = vmax.f32 %v531, 0.0
    %v540 = vmax.f32 %v532, 0.0
    %v541 = vmax.f32 %v533, 0.0
    %v542 = vmax.f32 %v534, 0.0
    %v543 = vmax.f32 %v535, 0.0
    %v544 = vmax.f32 %v536, %v540
    %v545 = vmax.f32 %v537, %v541
    %v546 = vmax.f32 %v538, %v542
    %v547 = vmax.f32 %v539, %v543
    %v548 = vld [vmem:[#allocation8] sm:$0xff]
    %v549 = vld [vmem:[#allocation8 + $0x8] sm:$0xff]
    %v550 = vld [vmem:[#allocation8 + $0x10] sm:$0xff]
    %v551 = vld [vmem:[#allocation8 + $0x18] sm:$0xff]
    %v552 = vld [vmem:[#allocation8 + $0x20] sm:$0xff]
    %v553 = vld [vmem:[#allocation8 + $0x28] sm:$0xff]
    %v554 = vld [vmem:[#allocation8 + $0x30] sm:$0xff]
    %v555 = vld [vmem:[#allocation8 + $0x38] sm:$0xff]
    %v556 = vld [vmem:[#allocation8 + $0x40] sm:$0xff]
    %v557 = vld [vmem:[#allocation8 + $0x48] sm:$0xff]
    %v558 = vld [vmem:[#allocation8 + $0x50] sm:$0xff]
    %v559 = vld [vmem:[#allocation8 + $0x58] sm:$0xff]
    %v560 = vld [vmem:[#allocation8 + $0x60] sm:$0xff]
    %v561 = vld [vmem:[#allocation8 + $0x68] sm:$0xff]
    %v562 = vld [vmem:[#allocation8 + $0x70] sm:$0xff]
    %v563 = vld [vmem:[#allocation8 + $0x78] sm:$0xff]
    %v564 = vld [vmem:[#allocation8 + $0x80] sm:$0xff]
    %v565 = vld [vmem:[#allocation8 + $0x88] sm:$0xff]
    %v566 = vld [vmem:[#allocation8 + $0x90] sm:$0xff]
    %v567 = vld [vmem:[#allocation8 + $0x98] sm:$0xff]
    %v568 = vld [vmem:[#allocation8 + $0xa0] sm:$0xff]
    %v569 = vld [vmem:[#allocation8 + $0xa8] sm:$0xff]
    %v570 = vld [vmem:[#allocation8 + $0xb0] sm:$0xff]
    %v571 = vld [vmem:[#allocation8 + $0xb8] sm:$0xff]
    %v572 = vld [vmem:[#allocation8 + $0xc0] sm:$0xff]
    %v573 = vld [vmem:[#allocation8 + $0xc8] sm:$0xff]
    %v574 = vld [vmem:[#allocation8 + $0xd0] sm:$0xff]
    %v575 = vld [vmem:[#allocation8 + $0xd8] sm:$0xff]
    %v576 = vld [vmem:[#allocation8 + $0xe0] sm:$0xff]
    %v577 = vld [vmem:[#allocation8 + $0xe8] sm:$0xff]
    %v578 = vld [vmem:[#allocation8 + $0xf0] sm:$0xff]
    %v579 = vld [vmem:[#allocation8 + $0xf8] sm:$0xff]
    %v580 = vld [vmem:[#allocation8 + $0x100] sm:$0xff]
    %v581 = vld [vmem:[#allocation8 + $0x108] sm:$0xff]
    %v582 = vld [vmem:[#allocation8 + $0x110] sm:$0xff]
    %v583 = vld [vmem:[#allocation8 + $0x118] sm:$0xff]
    %v584 = vld [vmem:[#allocation8 + $0x120] sm:$0xff]
    %v585 = vld [vmem:[#allocation8 + $0x128] sm:$0xff]
    %v586 = vld [vmem:[#allocation8 + $0x130] sm:$0xff]
    %v587 = vld [vmem:[#allocation8 + $0x138] sm:$0xff]
    %v588 = vld [vmem:[#allocation8 + $0x140] sm:$0xff]
    %v589 = vld [vmem:[#allocation8 + $0x148] sm:$0xff]
    %v590 = vld [vmem:[#allocation8 + $0x150] sm:$0xff]
    %v591 = vld [vmem:[#allocation8 + $0x158] sm:$0xff]
    %v592 = vld [vmem:[#allocation8 + $0x160] sm:$0xff]
    %v593 = vld [vmem:[#allocation8 + $0x168] sm:$0xff]
    %v594 = vld [vmem:[#allocation8 + $0x170] sm:$0xff]
    %v595 = vld [vmem:[#allocation8 + $0x178] sm:$0xff]
    %v596 = vld [vmem:[#allocation8 + $0x180] sm:$0xff]
    %v597 = vld [vmem:[#allocation8 + $0x188] sm:$0xff]
    %v598 = vld [vmem:[#allocation8 + $0x190] sm:$0xff]
    %v599 = vld [vmem:[#allocation8 + $0x198] sm:$0xff]
    %v600 = vld [vmem:[#allocation8 + $0x1a0] sm:$0xff]
    %v601 = vld [vmem:[#allocation8 + $0x1a8] sm:$0xff]
    %v602 = vld [vmem:[#allocation8 + $0x1b0] sm:$0xff]
    %v603 = vld [vmem:[#allocation8 + $0x1b8] sm:$0xff]
    %v604 = vld [vmem:[#allocation8 + $0x1c0] sm:$0xff]
    %v605 = vld [vmem:[#allocation8 + $0x1c8] sm:$0xff]
    %v606 = vld [vmem:[#allocation8 + $0x1d0] sm:$0xff]
    %v607 = vld [vmem:[#allocation8 + $0x1d8] sm:$0xff]
    %v608 = vld [vmem:[#allocation8 + $0x1e0] sm:$0xff]
    %v609 = vld [vmem:[#allocation8 + $0x1e8] sm:$0xff]
    %v610 = vld [vmem:[#allocation8 + $0x1f0] sm:$0xff]
    %v611 = vld [vmem:[#allocation8 + $0x1f8] sm:$0xff]
    %v612 = vld [vmem:[#allocation8 + $0x200] sm:$0xff]
    %v613 = vld [vmem:[#allocation8 + $0x208] sm:$0xff]
    %v614 = vld [vmem:[#allocation8 + $0x210] sm:$0xff]
    %v615 = vld [vmem:[#allocation8 + $0x218] sm:$0xff]
    %v616 = vld [vmem:[#allocation8 + $0x220] sm:$0xff]
    %v617 = vld [vmem:[#allocation8 + $0x228] sm:$0xff]
    %v618 = vld [vmem:[#allocation8 + $0x230] sm:$0xff]
    %v619 = vld [vmem:[#allocation8 + $0x238] sm:$0xff]
    %v620 = vld [vmem:[#allocation8 + $0x240] sm:$0xff]
    %v621 = vld [vmem:[#allocation8 + $0x248] sm:$0xff]
    %v622 = vld [vmem:[#allocation8 + $0x250] sm:$0xff]
    %v623 = vld [vmem:[#allocation8 + $0x258] sm:$0xff]
    %v624 = vld [vmem:[#allocation8 + $0x260] sm:$0xff]
    %v625 = vld [vmem:[#allocation8 + $0x268] sm:$0xff]
    %v626 = vld [vmem:[#allocation8 + $0x270] sm:$0xff]
    %v627 = vld [vmem:[#allocation8 + $0x278] sm:$0xff]
    %v628 = vld [vmem:[#allocation8 + $0x280] sm:$0xff]
    %v629 = vld [vmem:[#allocation8 + $0x288] sm:$0xff]
    %v630 = vld [vmem:[#allocation8 + $0x290] sm:$0xff]
    %v631 = vld [vmem:[#allocation8 + $0x298] sm:$0xff]
    %v632 = vld [vmem:[#allocation8 + $0x2a0] sm:$0xff]
    %v633 = vld [vmem:[#allocation8 + $0x2a8] sm:$0xff]
    %v634 = vld [vmem:[#allocation8 + $0x2b0] sm:$0xff]
    %v635 = vld [vmem:[#allocation8 + $0x2b8] sm:$0xff]
    %v636 = vld [vmem:[#allocation8 + $0x2c0] sm:$0xff]
    %v637 = vld [vmem:[#allocation8 + $0x2c8] sm:$0xff]
    %v638 = vld [vmem:[#allocation8 + $0x2d0] sm:$0xff]
    %v639 = vld [vmem:[#allocation8 + $0x2d8] sm:$0xff]
    %v640 = vld [vmem:[#allocation8 + $0x2e0] sm:$0xff]
    %v641 = vld [vmem:[#allocation8 + $0x2e8] sm:$0xff]
    %v642 = vld [vmem:[#allocation8 + $0x2f0] sm:$0xff]
    %v643 = vld [vmem:[#allocation8 + $0x2f8] sm:$0xff]
    %v644 = vld [vmem:[#allocation8 + $0x300] sm:$0xff]
    %v645 = vld [vmem:[#allocation8 + $0x308] sm:$0xff]
    %v646 = vld [vmem:[#allocation8 + $0x310] sm:$0xff]
    %v647 = vld [vmem:[#allocation8 + $0x318] sm:$0xff]
    %v648 = vld [vmem:[#allocation8 + $0x320] sm:$0xff]
    %v649 = vld [vmem:[#allocation8 + $0x328] sm:$0xff]
    %v650 = vld [vmem:[#allocation8 + $0x330] sm:$0xff]
    %v651 = vld [vmem:[#allocation8 + $0x338] sm:$0xff]
    %v652 = vld [vmem:[#allocation8 + $0x340] sm:$0xff]
    %v653 = vld [vmem:[#allocation8 + $0x348] sm:$0xff]
    %v654 = vld [vmem:[#allocation8 + $0x350] sm:$0xff]
    %v655 = vld [vmem:[#allocation8 + $0x358] sm:$0xff]
    %v656 = vld [vmem:[#allocation8 + $0x360] sm:$0xff]
    %v657 = vld [vmem:[#allocation8 + $0x368] sm:$0xff]
    %v658 = vld [vmem:[#allocation8 + $0x370] sm:$0xff]
    %v659 = vld [vmem:[#allocation8 + $0x378] sm:$0xff]
    %v660 = vld [vmem:[#allocation8 + $0x380] sm:$0xff]
    %v661 = vld [vmem:[#allocation8 + $0x388] sm:$0xff]
    %v662 = vld [vmem:[#allocation8 + $0x390] sm:$0xff]
    %v663 = vld [vmem:[#allocation8 + $0x398] sm:$0xff]
    %v664 = vld [vmem:[#allocation8 + $0x3a0] sm:$0xff]
    %v665 = vld [vmem:[#allocation8 + $0x3a8] sm:$0xff]
    %v666 = vld [vmem:[#allocation8 + $0x3b0] sm:$0xff]
    %v667 = vld [vmem:[#allocation8 + $0x3b8] sm:$0xff]
    %v668 = vld [vmem:[#allocation8 + $0x3c0] sm:$0xff]
    %v669 = vld [vmem:[#allocation8 + $0x3c8] sm:$0xff]
    %v670 = vld [vmem:[#allocation8 + $0x3d0] sm:$0xff]
    %v671 = vld [vmem:[#allocation8 + $0x3d8] sm:$0xff]
    %v672 = vld [vmem:[#allocation8 + $0x3e0] sm:$0xff]
    %v673 = vld [vmem:[#allocation8 + $0x3e8] sm:$0xff]
    %v674 = vld [vmem:[#allocation8 + $0x3f0] sm:$0xff]
    %v675 = vld [vmem:[#allocation8 + $0x3f8] sm:$0xff]
    %v676 = vld [vmem:[#allocation8 + $0x400] sm:$0xff]
    %v677 = vld [vmem:[#allocation8 + $0x408] sm:$0xff]
    %v678 = vld [vmem:[#allocation8 + $0x410] sm:$0xff]
    %v679 = vld [vmem:[#allocation8 + $0x418] sm:$0xff]
    %v680 = vld [vmem:[#allocation8 + $0x420] sm:$0xff]
    %v681 = vld [vmem:[#allocation8 + $0x428] sm:$0xff]
    %v682 = vld [vmem:[#allocation8 + $0x430] sm:$0xff]
    %v683 = vld [vmem:[#allocation8 + $0x438] sm:$0xff]
    %v684 = vld [vmem:[#allocation8 + $0x440] sm:$0xff]
    %v685 = vld [vmem:[#allocation8 + $0x448] sm:$0xff]
    %v686 = vld [vmem:[#allocation8 + $0x450] sm:$0xff]
    %v687 = vld [vmem:[#allocation8 + $0x458] sm:$0xff]
    %v688 = vld [vmem:[#allocation8 + $0x460] sm:$0xff]
    %v689 = vld [vmem:[#allocation8 + $0x468] sm:$0xff]
    %v690 = vld [vmem:[#allocation8 + $0x470] sm:$0xff]
    %v691 = vld [vmem:[#allocation8 + $0x478] sm:$0xff]
    %v692 = vld [vmem:[#allocation8 + $0x480] sm:$0xff]
    %v693 = vld [vmem:[#allocation8 + $0x488] sm:$0xff]
    %v694 = vld [vmem:[#allocation8 + $0x490] sm:$0xff]
    %v695 = vld [vmem:[#allocation8 + $0x498] sm:$0xff]
    %v696 = vld [vmem:[#allocation8 + $0x4a0] sm:$0xff]
    %v697 = vld [vmem:[#allocation8 + $0x4a8] sm:$0xff]
    %v698 = vld [vmem:[#allocation8 + $0x4b0] sm:$0xff]
    %v699 = vld [vmem:[#allocation8 + $0x4b8] sm:$0xff]
    %v700 = vld [vmem:[#allocation8 + $0x4c0] sm:$0xff]
    %v701 = vld [vmem:[#allocation8 + $0x4c8] sm:$0xff]
    %v702 = vld [vmem:[#allocation8 + $0x4d0] sm:$0xff]
    %v703 = vld [vmem:[#allocation8 + $0x4d8] sm:$0xff]
    %v704 = vld [vmem:[#allocation8 + $0x4e0] sm:$0xff]
    %v705 = vld [vmem:[#allocation8 + $0x4e8] sm:$0xff]
    %v706 = vld [vmem:[#allocation8 + $0x4f0] sm:$0xff]
    %v707 = vld [vmem:[#allocation8 + $0x4f8] sm:$0xff]
    %v708 = vld [vmem:[#allocation8 + $0x500] sm:$0xff]
    %v709 = vld [vmem:[#allocation8 + $0x508] sm:$0xff]
    %v710 = vld [vmem:[#allocation8 + $0x510] sm:$0xff]
    %v711 = vld [vmem:[#allocation8 + $0x518] sm:$0xff]
    %v712 = vld [vmem:[#allocation8 + $0x520] sm:$0xff]
    %v713 = vld [vmem:[#allocation8 + $0x528] sm:$0xff]
    %v714 = vld [vmem:[#allocation8 + $0x530] sm:$0xff]
    %v715 = vld [vmem:[#allocation8 + $0x538] sm:$0xff]
    %v716 = vld [vmem:[#allocation8 + $0x540] sm:$0xff]
    %v717 = vld [vmem:[#allocation8 + $0x548] sm:$0xff]
    %v718 = vld [vmem:[#allocation8 + $0x550] sm:$0xff]
    %v719 = vld [vmem:[#allocation8 + $0x558] sm:$0xff]
    %v720 = vld [vmem:[#allocation8 + $0x560] sm:$0xff]
    %v721 = vld [vmem:[#allocation8 + $0x568] sm:$0xff]
    %v722 = vld [vmem:[#allocation8 + $0x570] sm:$0xff]
    %v723 = vld [vmem:[#allocation8 + $0x578] sm:$0xff]
    %v724 = vld [vmem:[#allocation8 + $0x580] sm:$0xff]
    %v725 = vld [vmem:[#allocation8 + $0x588] sm:$0xff]
    %v726 = vld [vmem:[#allocation8 + $0x590] sm:$0xff]
    %v727 = vld [vmem:[#allocation8 + $0x598] sm:$0xff]
    %v728 = vld [vmem:[#allocation8 + $0x5a0] sm:$0xff]
    %v729 = vld [vmem:[#allocation8 + $0x5a8] sm:$0xff]
    %v730 = vld [vmem:[#allocation8 + $0x5b0] sm:$0xff]
    %v731 = vld [vmem:[#allocation8 + $0x5b8] sm:$0xff]
    %v732 = vld [vmem:[#allocation8 + $0x5c0] sm:$0xff]
    %v733 = vld [vmem:[#allocation8 + $0x5c8] sm:$0xff]
    %v734 = vld [vmem:[#allocation8 + $0x5d0] sm:$0xff]
    %v735 = vld [vmem:[#allocation8 + $0x5d8] sm:$0xff]
    %v736 = vld [vmem:[#allocation8 + $0x5e0] sm:$0xff]
    %v737 = vld [vmem:[#allocation8 + $0x5e8] sm:$0xff]
    %v738 = vld [vmem:[#allocation8 + $0x5f0] sm:$0xff]
    %v739 = vld [vmem:[#allocation8 + $0x5f8] sm:$0xff]
    %v740 = vld [vmem:[#allocation8 + $0x600] sm:$0xff]
    %v741 = vld [vmem:[#allocation8 + $0x608] sm:$0xff]
    %v742 = vld [vmem:[#allocation8 + $0x610] sm:$0xff]
    %v743 = vld [vmem:[#allocation8 + $0x618] sm:$0xff]
    %v744 = vld [vmem:[#allocation8 + $0x620] sm:$0xff]
    %v745 = vld [vmem:[#allocation8 + $0x628] sm:$0xff]
    %v746 = vld [vmem:[#allocation8 + $0x630] sm:$0xff]
    %v747 = vld [vmem:[#allocation8 + $0x638] sm:$0xff]
    %v748 = vld [vmem:[#allocation8 + $0x640] sm:$0xff]
    %v749 = vld [vmem:[#allocation8 + $0x648] sm:$0xff]
    %v750 = vld [vmem:[#allocation8 + $0x650] sm:$0xff]
    %v751 = vld [vmem:[#allocation8 + $0x658] sm:$0xff]
    %v752 = vld [vmem:[#allocation8 + $0x660] sm:$0xff]
    %v753 = vld [vmem:[#allocation8 + $0x668] sm:$0xff]
    %v754 = vld [vmem:[#allocation8 + $0x670] sm:$0xff]
    %v755 = vld [vmem:[#allocation8 + $0x678] sm:$0xff]
    %v756 = vld [vmem:[#allocation8 + $0x680] sm:$0xff]
    %v757 = vld [vmem:[#allocation8 + $0x688] sm:$0xff]
    %v758 = vld [vmem:[#allocation8 + $0x690] sm:$0xff]
    %v759 = vld [vmem:[#allocation8 + $0x698] sm:$0xff]
    %v760 = vld [vmem:[#allocation8 + $0x6a0] sm:$0xff]
    %v761 = vld [vmem:[#allocation8 + $0x6a8] sm:$0xff]
    %v762 = vld [vmem:[#allocation8 + $0x6b0] sm:$0xff]
    %v763 = vld [vmem:[#allocation8 + $0x6b8] sm:$0xff]
    %v764 = vld [vmem:[#allocation8 + $0x6c0] sm:$0xff]
    %v765 = vld [vmem:[#allocation8 + $0x6c8] sm:$0xff]
    %v766 = vld [vmem:[#allocation8 + $0x6d0] sm:$0xff]
    %v767 = vld [vmem:[#allocation8 + $0x6d8] sm:$0xff]
    %v768 = vld [vmem:[#allocation8 + $0x6e0] sm:$0xff]
    %v769 = vld [vmem:[#allocation8 + $0x6e8] sm:$0xff]
    %v770 = vld [vmem:[#allocation8 + $0x6f0] sm:$0xff]
    %v771 = vld [vmem:[#allocation8 + $0x6f8] sm:$0xff]
    %v772 = vld [vmem:[#allocation8 + $0x700] sm:$0xff]
    %v773 = vld [vmem:[#allocation8 + $0x708] sm:$0xff]
    %v774 = vld [vmem:[#allocation8 + $0x710] sm:$0xff]
    %v775 = vld [vmem:[#allocation8 + $0x718] sm:$0xff]
    %v776 = vld [vmem:[#allocation8 + $0x720] sm:$0xff]
    %v777 = vld [vmem:[#allocation8 + $0x728] sm:$0xff]
    %v778 = vld [vmem:[#allocation8 + $0x730] sm:$0xff]
    %v779 = vld [vmem:[#allocation8 + $0x738] sm:$0xff]
    %v780 = vld [vmem:[#allocation8 + $0x740] sm:$0xff]
    %v781 = vld [vmem:[#allocation8 + $0x748] sm:$0xff]
    %v782 = vld [vmem:[#allocation8 + $0x750] sm:$0xff]
    %v783 = vld [vmem:[#allocation8 + $0x758] sm:$0xff]
    %v784 = vld [vmem:[#allocation8 + $0x760] sm:$0xff]
    %v785 = vld [vmem:[#allocation8 + $0x768] sm:$0xff]
    %v786 = vld [vmem:[#allocation8 + $0x770] sm:$0xff]
    %v787 = vld [vmem:[#allocation8 + $0x778] sm:$0xff]
    %v788 = vld [vmem:[#allocation8 + $0x780] sm:$0xff]
    %v789 = vld [vmem:[#allocation8 + $0x788] sm:$0xff]
    %v790 = vld [vmem:[#allocation8 + $0x790] sm:$0xff]
    %v791 = vld [vmem:[#allocation8 + $0x798] sm:$0xff]
    %v792 = vld [vmem:[#allocation8 + $0x7a0] sm:$0xff]
    %v793 = vld [vmem:[#allocation8 + $0x7a8] sm:$0xff]
    %v794 = vld [vmem:[#allocation8 + $0x7b0] sm:$0xff]
    %v795 = vld [vmem:[#allocation8 + $0x7b8] sm:$0xff]
    %v796 = vld [vmem:[#allocation8 + $0x7c0] sm:$0xff]
    %v797 = vld [vmem:[#allocation8 + $0x7c8] sm:$0xff]
    %v798 = vld [vmem:[#allocation8 + $0x7d0] sm:$0xff]
    %v799 = vld [vmem:[#allocation8 + $0x7d8] sm:$0xff]
    %v800 = vld [vmem:[#allocation8 + $0x7e0] sm:$0xff]
    %v801 = vld [vmem:[#allocation8 + $0x7e8] sm:$0xff]
    %v802 = vld [vmem:[#allocation8 + $0x7f0] sm:$0xff]
    %v803 = vld [vmem:[#allocation8 + $0x7f8] sm:$0xff]
    %v804 = vld [vmem:[#allocation8 + $0x800] sm:$0xff]
    %v805 = vld [vmem:[#allocation8 + $0x808] sm:$0xff]
    %v806 = vld [vmem:[#allocation8 + $0x810] sm:$0xff]
    %v807 = vld [vmem:[#allocation8 + $0x818] sm:$0xff]
    %v808 = vld [vmem:[#allocation8 + $0x820] sm:$0xff]
    %v809 = vld [vmem:[#allocation8 + $0x828] sm:$0xff]
    %v810 = vld [vmem:[#allocation8 + $0x830] sm:$0xff]
    %v811 = vld [vmem:[#allocation8 + $0x838] sm:$0xff]
    %v812 = vld [vmem:[#allocation8 + $0x840] sm:$0xff]
    %v813 = vld [vmem:[#allocation8 + $0x848] sm:$0xff]
    %v814 = vld [vmem:[#allocation8 + $0x850] sm:$0xff]
    %v815 = vld [vmem:[#allocation8 + $0x858] sm:$0xff]
    %v816 = vld [vmem:[#allocation8 + $0x860] sm:$0xff]
    %v817 = vld [vmem:[#allocation8 + $0x868] sm:$0xff]
    %v818 = vld [vmem:[#allocation8 + $0x870] sm:$0xff]
    %v819 = vld [vmem:[#allocation8 + $0x878] sm:$0xff]
    %v820 = vld [vmem:[#allocation8 + $0x880] sm:$0xff]
    %v821 = vld [vmem:[#allocation8 + $0x888] sm:$0xff]
    %v822 = vld [vmem:[#allocation8 + $0x890] sm:$0xff]
    %v823 = vld [vmem:[#allocation8 + $0x898] sm:$0xff]
    %v824 = vld [vmem:[#allocation8 + $0x8a0] sm:$0xff]
    %v825 = vld [vmem:[#allocation8 + $0x8a8] sm:$0xff]
    %v826 = vld [vmem:[#allocation8 + $0x8b0] sm:$0xff]
    %v827 = vld [vmem:[#allocation8 + $0x8b8] sm:$0xff]
    %v828 = vld [vmem:[#allocation8 + $0x8c0] sm:$0xff]
    %v829 = vld [vmem:[#allocation8 + $0x8c8] sm:$0xff]
    %v830 = vld [vmem:[#allocation8 + $0x8d0] sm:$0xff]
    %v831 = vld [vmem:[#allocation8 + $0x8d8] sm:$0xff]
    %v832 = vld [vmem:[#allocation8 + $0x8e0] sm:$0xff]
    %v833 = vld [vmem:[#allocation8 + $0x8e8] sm:$0xff]
    %v834 = vld [vmem:[#allocation8 + $0x8f0] sm:$0xff]
    %v835 = vld [vmem:[#allocation8 + $0x8f8] sm:$0xff]
    %v836 = vld [vmem:[#allocation8 + $0x900] sm:$0xff]
    %v837 = vld [vmem:[#allocation8 + $0x908] sm:$0xff]
    %v838 = vld [vmem:[#allocation8 + $0x910] sm:$0xff]
    %v839 = vld [vmem:[#allocation8 + $0x918] sm:$0xff]
    %v840 = vld [vmem:[#allocation8 + $0x920] sm:$0xff]
    %v841 = vld [vmem:[#allocation8 + $0x928] sm:$0xff]
    %v842 = vld [vmem:[#allocation8 + $0x930] sm:$0xff]
    %v843 = vld [vmem:[#allocation8 + $0x938] sm:$0xff]
    %v844 = vld [vmem:[#allocation8 + $0x940] sm:$0xff]
    %v845 = vld [vmem:[#allocation8 + $0x948] sm:$0xff]
    %v846 = vld [vmem:[#allocation8 + $0x950] sm:$0xff]
    %v847 = vld [vmem:[#allocation8 + $0x958] sm:$0xff]
    %v848 = vld [vmem:[#allocation8 + $0x960] sm:$0xff]
    %v849 = vld [vmem:[#allocation8 + $0x968] sm:$0xff]
    %v850 = vld [vmem:[#allocation8 + $0x970] sm:$0xff]
    %v851 = vld [vmem:[#allocation8 + $0x978] sm:$0xff]
    %v852 = vld [vmem:[#allocation8 + $0x980] sm:$0xff]
    %v853 = vld [vmem:[#allocation8 + $0x988] sm:$0xff]
    %v854 = vld [vmem:[#allocation8 + $0x990] sm:$0xff]
    %v855 = vld [vmem:[#allocation8 + $0x998] sm:$0xff]
    %v856 = vld [vmem:[#allocation8 + $0x9a0] sm:$0xff]
    %v857 = vld [vmem:[#allocation8 + $0x9a8] sm:$0xff]
    %v858 = vld [vmem:[#allocation8 + $0x9b0] sm:$0xff]
    %v859 = vld [vmem:[#allocation8 + $0x9b8] sm:$0xff]
    %v860 = vld [vmem:[#allocation8 + $0x9c0] sm:$0xff]
    %v861 = vld [vmem:[#allocation8 + $0x9c8] sm:$0xff]
    %v862 = vld [vmem:[#allocation8 + $0x9d0] sm:$0xff]
    %v863 = vld [vmem:[#allocation8 + $0x9d8] sm:$0xff]
    %v864 = vld [vmem:[#allocation8 + $0x9e0] sm:$0xff]
    %v865 = vld [vmem:[#allocation8 + $0x9e8] sm:$0xff]
    %v866 = vld [vmem:[#allocation8 + $0x9f0] sm:$0xff]
    %v867 = vld [vmem:[#allocation8 + $0x9f8] sm:$0xff]
    %v868 = vld [vmem:[#allocation8 + $0xa00] sm:$0xff]
    %v869 = vld [vmem:[#allocation8 + $0xa08] sm:$0xff]
    %v870 = vld [vmem:[#allocation8 + $0xa10] sm:$0xff]
    %v871 = vld [vmem:[#allocation8 + $0xa18] sm:$0xff]
    %v872 = vld [vmem:[#allocation8 + $0xa20] sm:$0xff]
    %v873 = vld [vmem:[#allocation8 + $0xa28] sm:$0xff]
    %v874 = vld [vmem:[#allocation8 + $0xa30] sm:$0xff]
    %v875 = vld [vmem:[#allocation8 + $0xa38] sm:$0xff]
    %v876 = vld [vmem:[#allocation8 + $0xa40] sm:$0xff]
    %v877 = vld [vmem:[#allocation8 + $0xa48] sm:$0xff]
    %v878 = vld [vmem:[#allocation8 + $0xa50] sm:$0xff]
    %v879 = vld [vmem:[#allocation8 + $0xa58] sm:$0xff]
    %v880 = vld [vmem:[#allocation8 + $0xa60] sm:$0xff]
    %v881 = vld [vmem:[#allocation8 + $0xa68] sm:$0xff]
    %v882 = vld [vmem:[#allocation8 + $0xa70] sm:$0xff]
    %v883 = vld [vmem:[#allocation8 + $0xa78] sm:$0xff]
    %v884 = vld [vmem:[#allocation8 + $0xa80] sm:$0xff]
    %v885 = vld [vmem:[#allocation8 + $0xa88] sm:$0xff]
    %v886 = vld [vmem:[#allocation8 + $0xa90] sm:$0xff]
    %v887 = vld [vmem:[#allocation8 + $0xa98] sm:$0xff]
    %v888 = vld [vmem:[#allocation8 + $0xaa0] sm:$0xff]
    %v889 = vld [vmem:[#allocation8 + $0xaa8] sm:$0xff]
    %v890 = vld [vmem:[#allocation8 + $0xab0] sm:$0xff]
    %v891 = vld [vmem:[#allocation8 + $0xab8] sm:$0xff]
    %v892 = vld [vmem:[#allocation8 + $0xac0] sm:$0xff]
    %v893 = vld [vmem:[#allocation8 + $0xac8] sm:$0xff]
    %v894 = vld [vmem:[#allocation8 + $0xad0] sm:$0xff]
    %v895 = vld [vmem:[#allocation8 + $0xad8] sm:$0xff]
    %v896 = vld [vmem:[#allocation8 + $0xae0] sm:$0xff]
    %v897 = vld [vmem:[#allocation8 + $0xae8] sm:$0xff]
    %v898 = vld [vmem:[#allocation8 + $0xaf0] sm:$0xff]
    %v899 = vld [vmem:[#allocation8 + $0xaf8] sm:$0xff]
    %v900 = vld [vmem:[#allocation8 + $0xb00] sm:$0xff]
    %v901 = vld [vmem:[#allocation8 + $0xb08] sm:$0xff]
    %v902 = vld [vmem:[#allocation8 + $0xb10] sm:$0xff]
    %v903 = vld [vmem:[#allocation8 + $0xb18] sm:$0xff]
    %v904 = vld [vmem:[#allocation8 + $0xb20] sm:$0xff]
    %v905 = vld [vmem:[#allocation8 + $0xb28] sm:$0xff]
    %v906 = vld [vmem:[#allocation8 + $0xb30] sm:$0xff]
    %v907 = vld [vmem:[#allocation8 + $0xb38] sm:$0xff]
    %v908 = vld [vmem:[#allocation8 + $0xb40] sm:$0xff]
    %v909 = vld [vmem:[#allocation8 + $0xb48] sm:$0xff]
    %v910 = vld [vmem:[#allocation8 + $0xb50] sm:$0xff]
    %v911 = vld [vmem:[#allocation8 + $0xb58] sm:$0xff]
    %v912 = vld [vmem:[#allocation8 + $0xb60] sm:$0xff]
    %v913 = vld [vmem:[#allocation8 + $0xb68] sm:$0xff]
    %v914 = vld [vmem:[#allocation8 + $0xb70] sm:$0xff]
    %v915 = vld [vmem:[#allocation8 + $0xb78] sm:$0xff]
    %v916 = vld [vmem:[#allocation8 + $0xb80] sm:$0xff]
    %v917 = vld [vmem:[#allocation8 + $0xb88] sm:$0xff]
    %v918 = vld [vmem:[#allocation8 + $0xb90] sm:$0xff]
    %v919 = vld [vmem:[#allocation8 + $0xb98] sm:$0xff]
    %v920 = vld [vmem:[#allocation8 + $0xba0] sm:$0xff]
    %v921 = vld [vmem:[#allocation8 + $0xba8] sm:$0xff]
    %v922 = vld [vmem:[#allocation8 + $0xbb0] sm:$0xff]
    %v923 = vld [vmem:[#allocation8 + $0xbb8] sm:$0xff]
    %v924 = vld [vmem:[#allocation8 + $0xbc0] sm:$0xff]
    %v925 = vld [vmem:[#allocation8 + $0xbc8] sm:$0xff]
    %v926 = vld [vmem:[#allocation8 + $0xbd0] sm:$0xff]
    %v927 = vld [vmem:[#allocation8 + $0xbd8] sm:$0xff]
    %v928 = vld [vmem:[#allocation8 + $0xbe0] sm:$0xff]
    %v929 = vld [vmem:[#allocation8 + $0xbe8] sm:$0xff]
    %v930 = vld [vmem:[#allocation8 + $0xbf0] sm:$0xff]
    %v931 = vld [vmem:[#allocation8 + $0xbf8] sm:$0xff]
    %v932 = vld [vmem:[#allocation8 + $0xc00] sm:$0xff]
    %v933 = vld [vmem:[#allocation8 + $0xc08] sm:$0xff]
    %v934 = vld [vmem:[#allocation8 + $0xc10] sm:$0xff]
    %v935 = vld [vmem:[#allocation8 + $0xc18] sm:$0xff]
    %v936 = vld [vmem:[#allocation8 + $0xc20] sm:$0xff]
    %v937 = vld [vmem:[#allocation8 + $0xc28] sm:$0xff]
    %v938 = vld [vmem:[#allocation8 + $0xc30] sm:$0xff]
    %v939 = vld [vmem:[#allocation8 + $0xc38] sm:$0xff]
    %v940 = vld [vmem:[#allocation8 + $0xc40] sm:$0xff]
    %v941 = vld [vmem:[#allocation8 + $0xc48] sm:$0xff]
    %v942 = vld [vmem:[#allocation8 + $0xc50] sm:$0xff]
    %v943 = vld [vmem:[#allocation8 + $0xc58] sm:$0xff]
    %v944 = vld [vmem:[#allocation8 + $0xc60] sm:$0xff]
    %v945 = vld [vmem:[#allocation8 + $0xc68] sm:$0xff]
    %v946 = vld [vmem:[#allocation8 + $0xc70] sm:$0xff]
    %v947 = vld [vmem:[#allocation8 + $0xc78] sm:$0xff]
    %v948 = vld [vmem:[#allocation8 + $0xc80] sm:$0xff]
    %v949 = vld [vmem:[#allocation8 + $0xc88] sm:$0xff]
    %v950 = vld [vmem:[#allocation8 + $0xc90] sm:$0xff]
    %v951 = vld [vmem:[#allocation8 + $0xc98] sm:$0xff]
    %v952 = vld [vmem:[#allocation8 + $0xca0] sm:$0xff]
    %v953 = vld [vmem:[#allocation8 + $0xca8] sm:$0xff]
    %v954 = vld [vmem:[#allocation8 + $0xcb0] sm:$0xff]
    %v955 = vld [vmem:[#allocation8 + $0xcb8] sm:$0xff]
    %v956 = vld [vmem:[#allocation8 + $0xcc0] sm:$0xff]
    %v957 = vld [vmem:[#allocation8 + $0xcc8] sm:$0xff]
    %v958 = vld [vmem:[#allocation8 + $0xcd0] sm:$0xff]
    %v959 = vld [vmem:[#allocation8 + $0xcd8] sm:$0xff]
    %v960 = vld [vmem:[#allocation8 + $0xce0] sm:$0xff]
    %v961 = vld [vmem:[#allocation8 + $0xce8] sm:$0xff]
    %v962 = vld [vmem:[#allocation8 + $0xcf0] sm:$0xff]
    %v963 = vld [vmem:[#allocation8 + $0xcf8] sm:$0xff]
    %v964 = vld [vmem:[#allocation8 + $0xd00] sm:$0xff]
    %v965 = vld [vmem:[#allocation8 + $0xd08] sm:$0xff]
    %v966 = vld [vmem:[#allocation8 + $0xd10] sm:$0xff]
    %v967 = vld [vmem:[#allocation8 + $0xd18] sm:$0xff]
    %v968 = vld [vmem:[#allocation8 + $0xd20] sm:$0xff]
    %v969 = vld [vmem:[#allocation8 + $0xd28] sm:$0xff]
    %v970 = vld [vmem:[#allocation8 + $0xd30] sm:$0xff]
    %v971 = vld [vmem:[#allocation8 + $0xd38] sm:$0xff]
    %v972 = vld [vmem:[#allocation8 + $0xd40] sm:$0xff]
    %v973 = vld [vmem:[#allocation8 + $0xd48] sm:$0xff]
    %v974 = vld [vmem:[#allocation8 + $0xd50] sm:$0xff]
    %v975 = vld [vmem:[#allocation8 + $0xd58] sm:$0xff]
    %v976 = vld [vmem:[#allocation8 + $0xd60] sm:$0xff]
    %v977 = vld [vmem:[#allocation8 + $0xd68] sm:$0xff]
    %v978 = vld [vmem:[#allocation8 + $0xd70] sm:$0xff]
    %v979 = vld [vmem:[#allocation8 + $0xd78] sm:$0xff]
    %v980 = vld [vmem:[#allocation8 + $0xd80] sm:$0xff]
    %v981 = vld [vmem:[#allocation8 + $0xd88] sm:$0xff]
    %v982 = vld [vmem:[#allocation8 + $0xd90] sm:$0xff]
    %v983 = vld [vmem:[#allocation8 + $0xd98] sm:$0xff]
    %v984 = vld [vmem:[#allocation8 + $0xda0] sm:$0xff]
    %v985 = vld [vmem:[#allocation8 + $0xda8] sm:$0xff]
    %v986 = vld [vmem:[#allocation8 + $0xdb0] sm:$0xff]
    %v987 = vld [vmem:[#allocation8 + $0xdb8] sm:$0xff]
    %v988 = vld [vmem:[#allocation8 + $0xdc0] sm:$0xff]
    %v989 = vld [vmem:[#allocation8 + $0xdc8] sm:$0xff]
    %v990 = vld [vmem:[#allocation8 + $0xdd0] sm:$0xff]
    %v991 = vld [vmem:[#allocation8 + $0xdd8] sm:$0xff]
    %v992 = vld [vmem:[#allocation8 + $0xde0] sm:$0xff]
    %v993 = vld [vmem:[#allocation8 + $0xde8] sm:$0xff]
    %v994 = vld [vmem:[#allocation8 + $0xdf0] sm:$0xff]
    %v995 = vld [vmem:[#allocation8 + $0xdf8] sm:$0xff]
    %v996 = vld [vmem:[#allocation8 + $0xe00] sm:$0xff]
    %v997 = vld [vmem:[#allocation8 + $0xe08] sm:$0xff]
    %v998 = vld [vmem:[#allocation8 + $0xe10] sm:$0xff]
    %v999 = vld [vmem:[#allocation8 + $0xe18] sm:$0xff]
    %v1000 = vld [vmem:[#allocation8 + $0xe20] sm:$0xff]
    %v1001 = vld [vmem:[#allocation8 + $0xe28] sm:$0xff]
    %v1002 = vld [vmem:[#allocation8 + $0xe30] sm:$0xff]
    %v1003 = vld [vmem:[#allocation8 + $0xe38] sm:$0xff]
    %v1004 = vld [vmem:[#allocation8 + $0xe40] sm:$0xff]
    %v1005 = vld [vmem:[#allocation8 + $0xe48] sm:$0xff]
    %v1006 = vld [vmem:[#allocation8 + $0xe50] sm:$0xff]
    %v1007 = vld [vmem:[#allocation8 + $0xe58] sm:$0xff]
    %v1008 = vld [vmem:[#allocation8 + $0xe60] sm:$0xff]
    %v1009 = vld [vmem:[#allocation8 + $0xe68] sm:$0xff]
    %v1010 = vld [vmem:[#allocation8 + $0xe70] sm:$0xff]
    %v1011 = vld [vmem:[#allocation8 + $0xe78] sm:$0xff]
    %v1012 = vld [vmem:[#allocation8 + $0xe80] sm:$0xff]
    %v1013 = vld [vmem:[#allocation8 + $0xe88] sm:$0xff]
    %v1014 = vld [vmem:[#allocation8 + $0xe90] sm:$0xff]
    %v1015 = vld [vmem:[#allocation8 + $0xe98] sm:$0xff]
    %v1016 = vld [vmem:[#allocation8 + $0xea0] sm:$0xff]
    %v1017 = vld [vmem:[#allocation8 + $0xea8] sm:$0xff]
    %v1018 = vld [vmem:[#allocation8 + $0xeb0] sm:$0xff]
    %v1019 = vld [vmem:[#allocation8 + $0xeb8] sm:$0xff]
    %v1020 = vld [vmem:[#allocation8 + $0xec0] sm:$0xff]
    %v1021 = vld [vmem:[#allocation8 + $0xec8] sm:$0xff]
    %v1022 = vld [vmem:[#allocation8 + $0xed0] sm:$0xff]
    %v1023 = vld [vmem:[#allocation8 + $0xed8] sm:$0xff]
    %v1024 = vld [vmem:[#allocation8 + $0xee0] sm:$0xff]
    %v1025 = vld [vmem:[#allocation8 + $0xee8] sm:$0xff]
    %v1026 = vld [vmem:[#allocation8 + $0xef0] sm:$0xff]
    %v1027 = vld [vmem:[#allocation8 + $0xef8] sm:$0xff]
    %v1028 = vld [vmem:[#allocation8 + $0xf00] sm:$0xff]
    %v1029 = vld [vmem:[#allocation8 + $0xf08] sm:$0xff]
    %v1030 = vld [vmem:[#allocation8 + $0xf10] sm:$0xff]
    %v1031 = vld [vmem:[#allocation8 + $0xf18] sm:$0xff]
    %v1032 = vld [vmem:[#allocation8 + $0xf20] sm:$0xff]
    %v1033 = vld [vmem:[#allocation8 + $0xf28] sm:$0xff]
    %v1034 = vld [vmem:[#allocation8 + $0xf30] sm:$0xff]
    %v1035 = vld [vmem:[#allocation8 + $0xf38] sm:$0xff]
    %v1036 = vld [vmem:[#allocation8 + $0xf40] sm:$0xff]
    %v1037 = vld [vmem:[#allocation8 + $0xf48] sm:$0xff]
    %v1038 = vld [vmem:[#allocation8 + $0xf50] sm:$0xff]
    %v1039 = vld [vmem:[#allocation8 + $0xf58] sm:$0xff]
    %v1040 = vld [vmem:[#allocation8 + $0xf60] sm:$0xff]
    %v1041 = vld [vmem:[#allocation8 + $0xf68] sm:$0xff]
    %v1042 = vld [vmem:[#allocation8 + $0xf70] sm:$0xff]
    %v1043 = vld [vmem:[#allocation8 + $0xf78] sm:$0xff]
    %v1044 = vld [vmem:[#allocation8 + $0xf80] sm:$0xff]
    %v1045 = vld [vmem:[#allocation8 + $0xf88] sm:$0xff]
    %v1046 = vld [vmem:[#allocation8 + $0xf90] sm:$0xff]
    %v1047 = vld [vmem:[#allocation8 + $0xf98] sm:$0xff]
    %v1048 = vld [vmem:[#allocation8 + $0xfa0] sm:$0xff]
    %v1049 = vld [vmem:[#allocation8 + $0xfa8] sm:$0xff]
    %v1050 = vld [vmem:[#allocation8 + $0xfb0] sm:$0xff]
    %v1051 = vld [vmem:[#allocation8 + $0xfb8] sm:$0xff]
    %v1052 = vld [vmem:[#allocation8 + $0xfc0] sm:$0xff]
    %v1053 = vld [vmem:[#allocation8 + $0xfc8] sm:$0xff]
    %v1054 = vld [vmem:[#allocation8 + $0xfd0] sm:$0xff]
    %v1055 = vld [vmem:[#allocation8 + $0xfd8] sm:$0xff]
    %v1056 = vld [vmem:[#allocation8 + $0xfe0] sm:$0xff]
    %v1057 = vld [vmem:[#allocation8 + $0xfe8] sm:$0xff]
    %v1058 = vld [vmem:[#allocation8 + $0xff0] sm:$0xff]
    %v1059 = vld [vmem:[#allocation8 + $0xff8] sm:$0xff]
    %1060 = vmatprep.subr.mxu0 %v549
    %1061 = vmatpush1.msra.mxu0 %v548
    %1062 = vmatprep.subr.mxu0 %v557
    %1063 = vmatpush1.msra.mxu0 %v556
    %1064 = vmatprep.subr.mxu0 %v565
    %1065 = vmatpush1.msra.mxu0 %v564
    %1066 = vmatprep.subr.mxu0 %v573
    %1067 = vmatpush1.msra.mxu0 %v572
    %1068 = vmatprep.subr.mxu0 %v581
    %1069 = vmatpush1.msra.mxu0 %v580
    %1070 = vmatprep.subr.mxu0 %v589
    %1071 = vmatpush1.msra.mxu0 %v588
    %1072 = vmatprep.subr.mxu0 %v597
    %1073 = vmatpush1.msra.mxu0 %v596
    %1074 = vmatprep.subr.mxu0 %v605
    %1075 = vmatpush1.msra.mxu0 %v604
    %1076 = vmatprep.subr.mxu0 %v613
    %1077 = vmatpush1.msra.mxu0 %v612
    %1078 = vmatprep.subr.mxu0 %v621
    %1079 = vmatpush1.msra.mxu0 %v620
    %1080 = vmatprep.subr.mxu0 %v629
    %1081 = vmatpush1.msra.mxu0 %v628
    %1082 = vmatprep.subr.mxu0 %v637
    %1083 = vmatpush1.msra.mxu0 %v636
    %1084 = vmatprep.subr.mxu0 %v645
    %1085 = vmatpush1.msra.mxu0 %v644
    %1086 = vmatprep.subr.mxu0 %v653
    %1087 = vmatpush1.msra.mxu0 %v652
    %1088 = vmatprep.subr.mxu0 %v661
    %1089 = vmatpush1.msra.mxu0 %v660
    %1090 = vmatprep.subr.mxu0 %v669
    %1091 = vmatpush1.msra.mxu0 %v668
    %1092 = vmatprep.subr.mxu0 %v677
    %1093 = vmatpush1.msra.mxu0 %v676
    %1094 = vmatprep.subr.mxu0 %v685
    %1095 = vmatpush1.msra.mxu0 %v684
    %1096 = vmatprep.subr.mxu0 %v693
    %1097 = vmatpush1.msra.mxu0 %v692
    %1098 = vmatprep.subr.mxu0 %v701
    %1099 = vmatpush1.msra.mxu0 %v700
    %1100 = vmatprep.subr.mxu0 %v709
    %1101 = vmatpush1.msra.mxu0 %v708
    %1102 = vmatprep.subr.mxu0 %v717
    %1103 = vmatpush1.msra.mxu0 %v716
    %1104 = vmatprep.subr.mxu0 %v725
    %1105 = vmatpush1.msra.mxu0 %v724
    %1106 = vmatprep.subr.mxu0 %v733
    %1107 = vmatpush1.msra.mxu0 %v732
    %1108 = vmatprep.subr.mxu0 %v741
    %1109 = vmatpush1.msra.mxu0 %v740
    %1110 = vmatprep.subr.mxu0 %v749
    %1111 = vmatpush1.msra.mxu0 %v748
    %1112 = vmatprep.subr.mxu0 %v757
    %1113 = vmatpush1.msra.mxu0 %v756
    %1114 = vmatprep.subr.mxu0 %v765
    %1115 = vmatpush1.msra.mxu0 %v764
    %1116 = vmatprep.subr.mxu0 %v773
    %1117 = vmatpush1.msra.mxu0 %v772
    %1118 = vmatprep.subr.mxu0 %v781
    %1119 = vmatpush1.msra.mxu0 %v780
    %1120 = vmatprep.subr.mxu0 %v789
    %1121 = vmatpush1.msra.mxu0 %v788
    %1122 = vmatprep.subr.mxu0 %v797
    %1123 = vmatpush1.msra.mxu0 %v796
    %1124 = vmatprep.mubr.f32.mxu0 %v545
    %1125 = vmatmul.mubr.f32.gmra.mrb[0].mxu0 %v544
    %v1126 = vpop.f32.mrb[0].mxu0
    %v1127 = vadd.f32 0.0, %v1126
    %v1128 = vpop.f32.mrb[0].mxu0
    %v1129 = vadd.f32 0.0, %v1128
    %1130 = vdwg.mxu0
    %1131 = vmatprep.subr.mxu0 %v805
    %1132 = vmatpush1.msra.mxu0 %v804
    %1133 = vmatprep.subr.mxu0 %v813
    %1134 = vmatpush1.msra.mxu0 %v812
    %1135 = vmatprep.subr.mxu0 %v821
    %1136 = vmatpush1.msra.mxu0 %v820
    %1137 = vmatprep.subr.mxu0 %v829
    %1138 = vmatpush1.msra.mxu0 %v828
    %1139 = vmatprep.subr.mxu0 %v837
    %1140 = vmatpush1.msra.mxu0 %v836
    %1141 = vmatprep.subr.mxu0 %v845
    %1142 = vmatpush1.msra.mxu0 %v844
    %1143 = vmatprep.subr.mxu0 %v853
    %1144 = vmatpush1.msra.mxu0 %v852
    %1145 = vmatprep.subr.mxu0 %v861
    %1146 = vmatpush1.msra.mxu0 %v860
    %1147 = vmatprep.subr.mxu0 %v869
    %1148 = vmatpush1.msra.mxu0 %v868
    %1149 = vmatprep.subr.mxu0 %v877
    %1150 = vmatpush1.msra.mxu0 %v876
    %1151 = vmatprep.subr.mxu0 %v885
    %1152 = vmatpush1.msra.mxu0 %v884
    %1153 = vmatprep.subr.mxu0 %v893
    %1154 = vmatpush1.msra.mxu0 %v892
    %1155 = vmatprep.subr.mxu0 %v901
    %1156 = vmatpush1.msra.mxu0 %v900
    %1157 = vmatprep.subr.mxu0 %v909
    %1158 = vmatpush1.msra.mxu0 %v908
    %1159 = vmatprep.subr.mxu0 %v917
    %1160 = vmatpush1.msra.mxu0 %v916
    %1161 = vmatprep.subr.mxu0 %v925
    %1162 = vmatpush1.msra.mxu0 %v924
    %1163 = vmatprep.subr.mxu0 %v933
    %1164 = vmatpush1.msra.mxu0 %v932
    %1165 = vmatprep.subr.mxu0 %v941
    %1166 = vmatpush1.msra.mxu0 %v940
    %1167 = vmatprep.subr.mxu0 %v949
    %1168 = vmatpush1.msra.mxu0 %v948
    %1169 = vmatprep.subr.mxu0 %v957
    %1170 = vmatpush1.msra.mxu0 %v956
    %1171 = vmatprep.subr.mxu0 %v965
    %1172 = vmatpush1.msra.mxu0 %v964
    %1173 = vmatprep.subr.mxu0 %v973
    %1174 = vmatpush1.msra.mxu0 %v972
    %1175 = vmatprep.subr.mxu0 %v981
    %1176 = vmatpush1.msra.mxu0 %v980
    %1177 = vmatprep.subr.mxu0 %v989
    %1178 = vmatpush1.msra.mxu0 %v988
    %1179 = vmatprep.subr.mxu0 %v997
    %1180 = vmatpush1.msra.mxu0 %v996
    %1181 = vmatprep.subr.mxu0 %v1005
    %1182 = vmatpush1.msra.mxu0 %v1004
    %1183 = vmatprep.subr.mxu0 %v1013
    %1184 = vmatpush1.msra.mxu0 %v1012
    %1185 = vmatprep.subr.mxu0 %v1021
    %1186 = vmatpush1.msra.mxu0 %v1020
    %1187 = vmatprep.subr.mxu0 %v1029
    %1188 = vmatpush1.msra.mxu0 %v1028
    %1189 = vmatprep.subr.mxu0 %v1037
    %1190 = vmatpush1.msra.mxu0 %v1036
    %1191 = vmatprep.subr.mxu0 %v1045
    %1192 = vmatpush1.msra.mxu0 %v1044
    %1193 = vmatprep.subr.mxu0 %v1053
    %1194 = vmatpush1.msra.mxu0 %v1052
    %1195 = vmatprep.mubr.f32.mxu0 %v547
    %1196 = vmatmul.mubr.f32.gmra.mrb[0].mxu0 %v546
    %v1197 = vpop.f32.mrb[0].mxu0
    %v1198 = vadd.f32 %v1127, %v1197
    %v1199 = vpop.f32.mrb[0].mxu0
    %v1200 = vadd.f32 %v1129, %v1199
    %1201 = vdwg.mxu0
    %1202 = vmatprep.subr.mxu0 %v551
    %1203 = vmatpush1.msra.mxu0 %v550
    %1204 = vmatprep.subr.mxu0 %v559
    %1205 = vmatpush1.msra.mxu0 %v558
    %1206 = vmatprep.subr.mxu0 %v567
    %1207 = vmatpush1.msra.mxu0 %v566
    %1208 = vmatprep.subr.mxu0 %v575
    %1209 = vmatpush1.msra.mxu0 %v574
    %1210 = vmatprep.subr.mxu0 %v583
    %1211 = vmatpush1.msra.mxu0 %v582
    %1212 = vmatprep.subr.mxu0 %v591
    %1213 = vmatpush1.msra.mxu0 %v590
    %1214 = vmatprep.subr.mxu0 %v599
    %1215 = vmatpush1.msra.mxu0 %v598
    %1216 = vmatprep.subr.mxu0 %v607
    %1217 = vmatpush1.msra.mxu0 %v606
    %1218 = vmatprep.subr.mxu0 %v615
    %1219 = vmatpush1.msra.mxu0 %v614
    %1220 = vmatprep.subr.mxu0 %v623
    %1221 = vmatpush1.msra.mxu0 %v622
    %1222 = vmatprep.subr.mxu0 %v631
    %1223 = vmatpush1.msra.mxu0 %v630
    %1224 = vmatprep.subr.mxu0 %v639
    %1225 = vmatpush1.msra.mxu0 %v638
    %1226 = vmatprep.subr.mxu0 %v647
    %1227 = vmatpush1.msra.mxu0 %v646
    %1228 = vmatprep.subr.mxu0 %v655
    %1229 = vmatpush1.msra.mxu0 %v654
    %1230 = vmatprep.subr.mxu0 %v663
    %1231 = vmatpush1.msra.mxu0 %v662
    %1232 = vmatprep.subr.mxu0 %v671
    %1233 = vmatpush1.msra.mxu0 %v670
    %1234 = vmatprep.subr.mxu0 %v679
    %1235 = vmatpush1.msra.mxu0 %v678
    %1236 = vmatprep.subr.mxu0 %v687
    %1237 = vmatpush1.msra.mxu0 %v686
    %1238 = vmatprep.subr.mxu0 %v695
    %1239 = vmatpush1.msra.mxu0 %v694
    %1240 = vmatprep.subr.mxu0 %v703
    %1241 = vmatpush1.msra.mxu0 %v702
    %1242 = vmatprep.subr.mxu0 %v711
    %1243 = vmatpush1.msra.mxu0 %v710
    %1244 = vmatprep.subr.mxu0 %v719
    %1245 = vmatpush1.msra.mxu0 %v718
    %1246 = vmatprep.subr.mxu0 %v727
    %1247 = vmatpush1.msra.mxu0 %v726
    %1248 = vmatprep.subr.mxu0 %v735
    %1249 = vmatpush1.msra.mxu0 %v734
    %1250 = vmatprep.subr.mxu0 %v743
    %1251 = vmatpush1.msra.mxu0 %v742
    %1252 = vmatprep.subr.mxu0 %v751
    %1253 = vmatpush1.msra.mxu0 %v750
    %1254 = vmatprep.subr.mxu0 %v759
    %1255 = vmatpush1.msra.mxu0 %v758
    %1256 = vmatprep.subr.mxu0 %v767
    %1257 = vmatpush1.msra.mxu0 %v766
    %1258 = vmatprep.subr.mxu0 %v775
    %1259 = vmatpush1.msra.mxu0 %v774
    %1260 = vmatprep.subr.mxu0 %v783
    %1261 = vmatpush1.msra.mxu0 %v782
    %1262 = vmatprep.subr.mxu0 %v791
    %1263 = vmatpush1.msra.mxu0 %v790
    %1264 = vmatprep.subr.mxu0 %v799
    %1265 = vmatpush1.msra.mxu0 %v798
    %1266 = vmatprep.mubr.f32.mxu0 %v545
    %1267 = vmatmul.mubr.f32.gmra.mrb[0].mxu0 %v544
    %v1268 = vpop.f32.mrb[0].mxu0
    %v1269 = vadd.f32 0.0, %v1268
    %v1270 = vpop.f32.mrb[0].mxu0
    %v1271 = vadd.f32 0.0, %v1270
    %1272 = vdwg.mxu0
    %1273 = vmatprep.subr.mxu0 %v807
    %1274 = vmatpush1.msra.mxu0 %v806
    %1275 = vmatprep.subr.mxu0 %v815
    %1276 = vmatpush1.msra.mxu0 %v814
    %1277 = vmatprep.subr.mxu0 %v823
    %1278 = vmatpush1.msra.mxu0 %v822
    %1279 = vmatprep.subr.mxu0 %v831
    %1280 = vmatpush1.msra.mxu0 %v830
    %1281 = vmatprep.subr.mxu0 %v839
    %1282 = vmatpush1.msra.mxu0 %v838
    %1283 = vmatprep.subr.mxu0 %v847
    %1284 = vmatpush1.msra.mxu0 %v846
    %1285 = vmatprep.subr.mxu0 %v855
    %1286 = vmatpush1.msra.mxu0 %v854
    %1287 = vmatprep.subr.mxu0 %v863
    %1288 = vmatpush1.msra.mxu0 %v862
    %1289 = vmatprep.subr.mxu0 %v871
    %1290 = vmatpush1.msra.mxu0 %v870
    %1291 = vmatprep.subr.mxu0 %v879
    %1292 = vmatpush1.msra.mxu0 %v878
    %1293 = vmatprep.subr.mxu0 %v887
    %1294 = vmatpush1.msra.mxu0 %v886
    %1295 = vmatprep.subr.mxu0 %v895
    %1296 = vmatpush1.msra.mxu0 %v894
    %1297 = vmatprep.subr.mxu0 %v903
    %1298 = vmatpush1.msra.mxu0 %v902
    %1299 = vmatprep.subr.mxu0 %v911
    %1300 = vmatpush1.msra.mxu0 %v910
    %1301 = vmatprep.subr.mxu0 %v919
    %1302 = vmatpush1.msra.mxu0 %v918
    %1303 = vmatprep.subr.mxu0 %v927
    %1304 = vmatpush1.msra.mxu0 %v926
    %1305 = vmatprep.subr.mxu0 %v935
    %1306 = vmatpush1.msra.mxu0 %v934
    %1307 = vmatprep.subr.mxu0 %v943
    %1308 = vmatpush1.msra.mxu0 %v942
    %1309 = vmatprep.subr.mxu0 %v951
    %1310 = vmatpush1.msra.mxu0 %v950
    %1311 = vmatprep.subr.mxu0 %v959
    %1312 = vmatpush1.msra.mxu0 %v958
    %1313 = vmatprep.subr.mxu0 %v967
    %1314 = vmatpush1.msra.mxu0 %v966
    %1315 = vmatprep.subr.mxu0 %v975
    %1316 = vmatpush1.msra.mxu0 %v974
    %1317 = vmatprep.subr.mxu0 %v983
    %1318 = vmatpush1.msra.mxu0 %v982
    %1319 = vmatprep.subr.mxu0 %v991
    %1320 = vmatpush1.msra.mxu0 %v990
    %1321 = vmatprep.subr.mxu0 %v999
    %1322 = vmatpush1.msra.mxu0 %v998
    %1323 = vmatprep.subr.mxu0 %v1007
    %1324 = vmatpush1.msra.mxu0 %v1006
    %1325 = vmatprep.subr.mxu0 %v1015
    %1326 = vmatpush1.msra.mxu0 %v1014
    %1327 = vmatprep.subr.mxu0 %v1023
    %1328 = vmatpush1.msra.mxu0 %v1022
    %1329 = vmatprep.subr.mxu0 %v1031
    %1330 = vmatpush1.msra.mxu0 %v1030
    %1331 = vmatprep.subr.mxu0 %v1039
    %1332 = vmatpush1.msra.mxu0 %v1038
    %1333 = vmatprep.subr.mxu0 %v1047
    %1334 = vmatpush1.msra.mxu0 %v1046
    %1335 = vmatprep.subr.mxu0 %v1055
    %1336 = vmatpush1.msra.mxu0 %v1054
    %1337 = vmatprep.mubr.f32.mxu0 %v547
    %1338 = vmatmul.mubr.f32.gmra.mrb[0].mxu0 %v546
    %v1339 = vpop.f32.mrb[0].mxu0
    %v1340 = vadd.f32 %v1269, %v1339
    %v1341 = vpop.f32.mrb[0].mxu0
    %v1342 = vadd.f32 %v1271, %v1341
    %1343 = vdwg.mxu0
    %1344 = vmatprep.subr.mxu0 %v553
    %1345 = vmatpush1.msra.mxu0 %v552
    %1346 = vmatprep.subr.mxu0 %v561
    %1347 = vmatpush1.msra.mxu0 %v560
    %1348 = vmatprep.subr.mxu0 %v569
    %1349 = vmatpush1.msra.mxu0 %v568
    %1350 = vmatprep.subr.mxu0 %v577
    %1351 = vmatpush1.msra.mxu0 %v576
    %1352 = vmatprep.subr.mxu0 %v585
    %1353 = vmatpush1.msra.mxu0 %v584
    %1354 = vmatprep.subr.mxu0 %v593
    %1355 = vmatpush1.msra.mxu0 %v592
    %1356 = vmatprep.subr.mxu0 %v601
    %1357 = vmatpush1.msra.mxu0 %v600
    %1358 = vmatprep.subr.mxu0 %v609
    %1359 = vmatpush1.msra.mxu0 %v608
    %1360 = vmatprep.subr.mxu0 %v617
    %1361 = vmatpush1.msra.mxu0 %v616
    %1362 = vmatprep.subr.mxu0 %v625
    %1363 = vmatpush1.msra.mxu0 %v624
    %1364 = vmatprep.subr.mxu0 %v633
    %1365 = vmatpush1.msra.mxu0 %v632
    %1366 = vmatprep.subr.mxu0 %v641
    %1367 = vmatpush1.msra.mxu0 %v640
    %1368 = vmatprep.subr.mxu0 %v649
    %1369 = vmatpush1.msra.mxu0 %v648
    %1370 = vmatprep.subr.mxu0 %v657
    %1371 = vmatpush1.msra.mxu0 %v656
    %1372 = vmatprep.subr.mxu0 %v665
    %1373 = vmatpush1.msra.mxu0 %v664
    %1374 = vmatprep.subr.mxu0 %v673
    %1375 = vmatpush1.msra.mxu0 %v672
    %1376 = vmatprep.subr.mxu0 %v681
    %1377 = vmatpush1.msra.mxu0 %v680
    %1378 = vmatprep.subr.mxu0 %v689
    %1379 = vmatpush1.msra.mxu0 %v688
    %1380 = vmatprep.subr.mxu0 %v697
    %1381 = vmatpush1.msra.mxu0 %v696
    %1382 = vmatprep.subr.mxu0 %v705
    %1383 = vmatpush1.msra.mxu0 %v704
    %1384 = vmatprep.subr.mxu0 %v713
    %1385 = vmatpush1.msra.mxu0 %v712
    %1386 = vmatprep.subr.mxu0 %v721
    %1387 = vmatpush1.msra.mxu0 %v720
    %1388 = vmatprep.subr.mxu0 %v729
    %1389 = vmatpush1.msra.mxu0 %v728
    %1390 = vmatprep.subr.mxu0 %v737
    %1391 = vmatpush1.msra.mxu0 %v736
    %1392 = vmatprep.subr.mxu0 %v745
    %1393 = vmatpush1.msra.mxu0 %v744
    %1394 = vmatprep.subr.mxu0 %v753
    %1395 = vmatpush1.msra.mxu0 %v752
    %1396 = vmatprep.subr.mxu0 %v761
    %1397 = vmatpush1.msra.mxu0 %v760
    %1398 = vmatprep.subr.mxu0 %v769
    %1399 = vmatpush1.msra.mxu0 %v768
    %1400 = vmatprep.subr.mxu0 %v777
    %1401 = vmatpush1.msra.mxu0 %v776
    %1402 = vmatprep.subr.mxu0 %v785
    %1403 = vmatpush1.msra.mxu0 %v784
    %1404 = vmatprep.subr.mxu0 %v793
    %1405 = vmatpush1.msra.mxu0 %v792
    %1406 = vmatprep.subr.mxu0 %v801
    %1407 = vmatpush1.msra.mxu0 %v800
    %1408 = vmatprep.mubr.f32.mxu0 %v545
    %1409 = vmatmul.mubr.f32.gmra.mrb[0].mxu0 %v544
    %v1410 = vpop.f32.mrb[0].mxu0
    %v1411 = vadd.f32 0.0, %v1410
    %v1412 = vpop.f32.mrb[0].mxu0
    %v1413 = vadd.f32 0.0, %v1412
    %1414 = vdwg.mxu0
    %1415 = vmatprep.subr.mxu0 %v809
    %1416 = vmatpush1.msra.mxu0 %v808
    %1417 = vmatprep.subr.mxu0 %v817
    %1418 = vmatpush1.msra.mxu0 %v816
    %1419 = vmatprep.subr.mxu0 %v825
    %1420 = vmatpush1.msra.mxu0 %v824
    %1421 = vmatprep.subr.mxu0 %v833
    %1422 = vmatpush1.msra.mxu0 %v832
    %1423 = vmatprep.subr.mxu0 %v841
    %1424 = vmatpush1.msra.mxu0 %v840
    %1425 = vmatprep.subr.mxu0 %v849
    %1426 = vmatpush1.msra.mxu0 %v848
    %1427 = vmatprep.subr.mxu0 %v857
    %1428 = vmatpush1.msra.mxu0 %v856
    %1429 = vmatprep.subr.mxu0 %v865
    %1430 = vmatpush1.msra.mxu0 %v864
    %1431 = vmatprep.subr.mxu0 %v873
    %1432 = vmatpush1.msra.mxu0 %v872
    %1433 = vmatprep.subr.mxu0 %v881
    %1434 = vmatpush1.msra.mxu0 %v880
    %1435 = vmatprep.subr.mxu0 %v889
    %1436 = vmatpush1.msra.mxu0 %v888
    %1437 = vmatprep.subr.mxu0 %v897
    %1438 = vmatpush1.msra.mxu0 %v896
    %1439 = vmatprep.subr.mxu0 %v905
    %1440 = vmatpush1.msra.mxu0 %v904
    %1441 = vmatprep.subr.mxu0 %v913
    %1442 = vmatpush1.msra.mxu0 %v912
    %1443 = vmatprep.subr.mxu0 %v921
    %1444 = vmatpush1.msra.mxu0 %v920
    %1445 = vmatprep.subr.mxu0 %v929
    %1446 = vmatpush1.msra.mxu0 %v928
    %1447 = vmatprep.subr.mxu0 %v937
    %1448 = vmatpush1.msra.mxu0 %v936
    %1449 = vmatprep.subr.mxu0 %v945
    %1450 = vmatpush1.msra.mxu0 %v944
    %1451 = vmatprep.subr.mxu0 %v953
    %1452 = vmatpush1.msra.mxu0 %v952
    %1453 = vmatprep.subr.mxu0 %v961
    %1454 = vmatpush1.msra.mxu0 %v960
    %1455 = vmatprep.subr.mxu0 %v969
    %1456 = vmatpush1.msra.mxu0 %v968
    %1457 = vmatprep.subr.mxu0 %v977
    %1458 = vmatpush1.msra.mxu0 %v976
    %1459 = vmatprep.subr.mxu0 %v985
    %1460 = vmatpush1.msra.mxu0 %v984
    %1461 = vmatprep.subr.mxu0 %v993
    %1462 = vmatpush1.msra.mxu0 %v992
    %1463 = vmatprep.subr.mxu0 %v1001
    %1464 = vmatpush1.msra.mxu0 %v1000
    %1465 = vmatprep.subr.mxu0 %v1009
    %1466 = vmatpush1.msra.mxu0 %v1008
    %1467 = vmatprep.subr.mxu0 %v1017
    %1468 = vmatpush1.msra.mxu0 %v1016
    %1469 = vmatprep.subr.mxu0 %v1025
    %1470 = vmatpush1.msra.mxu0 %v1024
    %1471 = vmatprep.subr.mxu0 %v1033
    %1472 = vmatpush1.msra.mxu0 %v1032
    %1473 = vmatprep.subr.mxu0 %v1041
    %1474 = vmatpush1.msra.mxu0 %v1040
    %1475 = vmatprep.subr.mxu0 %v1049
    %1476 = vmatpush1.msra.mxu0 %v1048
    %1477 = vmatprep.subr.mxu0 %v1057
    %1478 = vmatpush1.msra.mxu0 %v1056
    %1479 = vmatprep.mubr.f32.mxu0 %v547
    %1480 = vmatmul.mubr.f32.gmra.mrb[0].mxu0 %v546
    %v1481 = vpop.f32.mrb[0].mxu0
    %v1482 = vadd.f32 %v1411, %v1481
    %v1483 = vpop.f32.mrb[0].mxu0
    %v1484 = vadd.f32 %v1413, %v1483
    %1485 = vdwg.mxu0
    %1486 = vmatprep.subr.mxu0 %v555
    %1487 = vmatpush1.msra.mxu0 %v554
    %1488 = vmatprep.subr.mxu0 %v563
    %1489 = vmatpush1.msra.mxu0 %v562
    %1490 = vmatprep.subr.mxu0 %v571
    %1491 = vmatpush1.msra.mxu0 %v570
    %1492 = vmatprep.subr.mxu0 %v579
    %1493 = vmatpush1.msra.mxu0 %v578
    %1494 = vmatprep.subr.mxu0 %v587
    %1495 = vmatpush1.msra.mxu0 %v586
    %1496 = vmatprep.subr.mxu0 %v595
    %1497 = vmatpush1.msra.mxu0 %v594
    %1498 = vmatprep.subr.mxu0 %v603
    %1499 = vmatpush1.msra.mxu0 %v602
    %1500 = vmatprep.subr.mxu0 %v611
    %1501 = vmatpush1.msra.mxu0 %v610
    %1502 = vmatprep.subr.mxu0 %v619
    %1503 = vmatpush1.msra.mxu0 %v618
    %1504 = vmatprep.subr.mxu0 %v627
    %1505 = vmatpush1.msra.mxu0 %v626
    %1506 = vmatprep.subr.mxu0 %v635
    %1507 = vmatpush1.msra.mxu0 %v634
    %1508 = vmatprep.subr.mxu0 %v643
    %1509 = vmatpush1.msra.mxu0 %v642
    %1510 = vmatprep.subr.mxu0 %v651
    %1511 = vmatpush1.msra.mxu0 %v650
    %1512 = vmatprep.subr.mxu0 %v659
    %1513 = vmatpush1.msra.mxu0 %v658
    %1514 = vmatprep.subr.mxu0 %v667
    %1515 = vmatpush1.msra.mxu0 %v666
    %1516 = vmatprep.subr.mxu0 %v675
    %1517 = vmatpush1.msra.mxu0 %v674
    %1518 = vmatprep.subr.mxu0 %v683
    %1519 = vmatpush1.msra.mxu0 %v682
    %1520 = vmatprep.subr.mxu0 %v691
    %1521 = vmatpush1.msra.mxu0 %v690
    %1522 = vmatprep.subr.mxu0 %v699
    %1523 = vmatpush1.msra.mxu0 %v698
    %1524 = vmatprep.subr.mxu0 %v707
    %1525 = vmatpush1.msra.mxu0 %v706
    %1526 = vmatprep.subr.mxu0 %v715
    %1527 = vmatpush1.msra.mxu0 %v714
    %1528 = vmatprep.subr.mxu0 %v723
    %1529 = vmatpush1.msra.mxu0 %v722
    %1530 = vmatprep.subr.mxu0 %v731
    %1531 = vmatpush1.msra.mxu0 %v730
    %1532 = vmatprep.subr.mxu0 %v739
    %1533 = vmatpush1.msra.mxu0 %v738
    %1534 = vmatprep.subr.mxu0 %v747
    %1535 = vmatpush1.msra.mxu0 %v746
    %1536 = vmatprep.subr.mxu0 %v755
    %1537 = vmatpush1.msra.mxu0 %v754
    %1538 = vmatprep.subr.mxu0 %v763
    %1539 = vmatpush1.msra.mxu0 %v762
    %1540 = vmatprep.subr.mxu0 %v771
    %1541 = vmatpush1.msra.mxu0 %v770
    %1542 = vmatprep.subr.mxu0 %v779
    %1543 = vmatpush1.msra.mxu0 %v778
    %1544 = vmatprep.subr.mxu0 %v787
    %1545 = vmatpush1.msra.mxu0 %v786
    %1546 = vmatprep.subr.mxu0 %v795
    %1547 = vmatpush1.msra.mxu0 %v794
    %1548 = vmatprep.subr.mxu0 %v803
    %1549 = vmatpush1.msra.mxu0 %v802
    %1550 = vmatprep.mubr.f32.mxu0 %v545
    %1551 = vmatmul.mubr.f32.gmra.mrb[0].mxu0 %v544
    %v1552 = vpop.f32.mrb[0].mxu0
    %v1553 = vadd.f32 0.0, %v1552
    %v1554 = vpop.f32.mrb[0].mxu0
    %v1555 = vadd.f32 0.0, %v1554
    %1556 = vdwg.mxu0
    %1557 = vmatprep.subr.mxu0 %v811
    %1558 = vmatpush1.msra.mxu0 %v810
    %1559 = vmatprep.subr.mxu0 %v819
    %1560 = vmatpush1.msra.mxu0 %v818
    %1561 = vmatprep.subr.mxu0 %v827
    %1562 = vmatpush1.msra.mxu0 %v826
    %1563 = vmatprep.subr.mxu0 %v835
    %1564 = vmatpush1.msra.mxu0 %v834
    %1565 = vmatprep.subr.mxu0 %v843
    %1566 = vmatpush1.msra.mxu0 %v842
    %1567 = vmatprep.subr.mxu0 %v851
    %1568 = vmatpush1.msra.mxu0 %v850
    %1569 = vmatprep.subr.mxu0 %v859
    %1570 = vmatpush1.msra.mxu0 %v858
    %1571 = vmatprep.subr.mxu0 %v867
    %1572 = vmatpush1.msra.mxu0 %v866
    %1573 = vmatprep.subr.mxu0 %v875
    %1574 = vmatpush1.msra.mxu0 %v874
    %1575 = vmatprep.subr.mxu0 %v883
    %1576 = vmatpush1.msra.mxu0 %v882
    %1577 = vmatprep.subr.mxu0 %v891
    %1578 = vmatpush1.msra.mxu0 %v890
    %1579 = vmatprep.subr.mxu0 %v899
    %1580 = vmatpush1.msra.mxu0 %v898
    %1581 = vmatprep.subr.mxu0 %v907
    %1582 = vmatpush1.msra.mxu0 %v906
    %1583 = vmatprep.subr.mxu0 %v915
    %1584 = vmatpush1.msra.mxu0 %v914
    %1585 = vmatprep.subr.mxu0 %v923
    %1586 = vmatpush1.msra.mxu0 %v922
    %1587 = vmatprep.subr.mxu0 %v931
    %1588 = vmatpush1.msra.mxu0 %v930
    %1589 = vmatprep.subr.mxu0 %v939
    %1590 = vmatpush1.msra.mxu0 %v938
    %1591 = vmatprep.subr.mxu0 %v947
    %1592 = vmatpush1.msra.mxu0 %v946
    %1593 = vmatprep.subr.mxu0 %v955
    %1594 = vmatpush1.msra.mxu0 %v954
    %1595 = vmatprep.subr.mxu0 %v963
    %1596 = vmatpush1.msra.mxu0 %v962
    %1597 = vmatprep.subr.mxu0 %v971
    %1598 = vmatpush1.msra.mxu0 %v970
    %1599 = vmatprep.subr.mxu0 %v979
    %1600 = vmatpush1.msra.mxu0 %v978
    %1601 = vmatprep.subr.mxu0 %v987
    %1602 = vmatpush1.msra.mxu0 %v986
    %1603 = vmatprep.subr.mxu0 %v995
    %1604 = vmatpush1.msra.mxu0 %v994
    %1605 = vmatprep.subr.mxu0 %v1003
    %1606 = vmatpush1.msra.mxu0 %v1002
    %1607 = vmatprep.subr.mxu0 %v1011
    %1608 = vmatpush1.msra.mxu0 %v1010
    %1609 = vmatprep.subr.mxu0 %v1019
    %1610 = vmatpush1.msra.mxu0 %v1018
    %1611 = vmatprep.subr.mxu0 %v1027
    %1612 = vmatpush1.msra.mxu0 %v1026
    %1613 = vmatprep.subr.mxu0 %v1035
    %1614 = vmatpush1.msra.mxu0 %v1034
    %1615 = vmatprep.subr.mxu0 %v1043
    %1616 = vmatpush1.msra.mxu0 %v1042
    %1617 = vmatprep.subr.mxu0 %v1051
    %1618 = vmatpush1.msra.mxu0 %v1050
    %1619 = vmatprep.subr.mxu0 %v1059
    %1620 = vmatpush1.msra.mxu0 %v1058
    %1621 = vmatprep.mubr.f32.mxu0 %v547
    %1622 = vmatmul.mubr.f32.gmra.mrb[0].mxu0 %v546
    %v1623 = vpop.f32.mrb[0].mxu0
    %v1624 = vadd.f32 %v1553, %v1623
    %v1625 = vpop.f32.mrb[0].mxu0
    %v1626 = vadd.f32 %v1555, %v1625
    %1627 = vdwg.mxu0
    %v1628 = vld [vmem:[#allocation10] ss:$2 sm:$0xff]
    %v1630 = vlaneseq
    %v1631 = vshrl.u32 %v1630, 7
    %v1632 = vsub.s32 0, %v1631
    %v1633 = vrot.slane %v1628, %v1632
    %v1634 = vlaneseq
    %v1635 = vshrl.u32 %v1634, 7
    %v1636 = vsub.s32 1, %v1635
    %v1637 = vrot.slane %v1628, %v1636
    %v1638 = vlaneseq
    %v1639 = vshrl.u32 %v1638, 7
    %v1640 = vsub.s32 2, %v1639
    %v1641 = vrot.slane %v1628, %v1640
    %v1642 = vlaneseq
    %v1643 = vshrl.u32 %v1642, 7
    %v1644 = vsub.s32 3, %v1643
    %v1645 = vrot.slane %v1628, %v1644
    %v1646 = vlaneseq
    %v1647 = vshrl.u32 %v1646, 7
    %v1648 = vsub.s32 4, %v1647
    %v1649 = vrot.slane %v1628, %v1648
    %v1650 = vlaneseq
    %v1651 = vshrl.u32 %v1650, 7
    %v1652 = vsub.s32 5, %v1651
    %v1653 = vrot.slane %v1628, %v1652
    %v1654 = vlaneseq
    %v1655 = vshrl.u32 %v1654, 7
    %v1656 = vsub.s32 6, %v1655
    %v1657 = vrot.slane %v1628, %v1656
    %v1658 = vlaneseq
    %v1659 = vshrl.u32 %v1658, 7
    %v1660 = vsub.s32 7, %v1659
    %v1661 = vrot.slane %v1628, %v1660
    %v1670 = vmul.f32 %v1198, %v1633
    %v1671 = vmul.f32 %v1200, %v1637
    %v1672 = vmul.f32 %v1340, %v1641
    %v1673 = vmul.f32 %v1342, %v1645
    %v1674 = vmul.f32 %v1482, %v1649
    %v1675 = vmul.f32 %v1484, %v1653
    %v1676 = vmul.f32 %v1624, %v1657
    %v1677 = vmul.f32 %v1626, %v1661
    %s1678 = scalar_lea.vmem [#allocation10], 1
    %v1679 = vld [vmem:[%s1678] ss:$2 sm:$0xff]
    %v1681 = vlaneseq
    %v1682 = vshrl.u32 %v1681, 7
    %v1683 = vsub.s32 0, %v1682
    %v1684 = vrot.slane %v1679, %v1683
    %v1685 = vlaneseq
    %v1686 = vshrl.u32 %v1685, 7
    %v1687 = vsub.s32 1, %v1686
    %v1688 = vrot.slane %v1679, %v1687
    %v1689 = vlaneseq
    %v1690 = vshrl.u32 %v1689, 7
    %v1691 = vsub.s32 2, %v1690
    %v1692 = vrot.slane %v1679, %v1691
    %v1693 = vlaneseq
    %v1694 = vshrl.u32 %v1693, 7
    %v1695 = vsub.s32 3, %v1694
    %v1696 = vrot.slane %v1679, %v1695
    %v1697 = vlaneseq
    %v1698 = vshrl.u32 %v1697, 7
    %v1699 = vsub.s32 4, %v1698
    %v1700 = vrot.slane %v1679, %v1699
    %v1701 = vlaneseq
    %v1702 = vshrl.u32 %v1701, 7
    %v1703 = vsub.s32 5, %v1702
    %v1704 = vrot.slane %v1679, %v1703
    %v1705 = vlaneseq
    %v1706 = vshrl.u32 %v1705, 7
    %v1707 = vsub.s32 6, %v1706
    %v1708 = vrot.slane %v1679, %v1707
    %v1709 = vlaneseq
    %v1710 = vshrl.u32 %v1709, 7
    %v1711 = vsub.s32 7, %v1710
    %v1712 = vrot.slane %v1679, %v1711
    %v1721 = vadd.f32 %v1670, %v1684
    %v1722 = vadd.f32 %v1671, %v1688
    %v1723 = vadd.f32 %v1672, %v1692
    %v1724 = vadd.f32 %v1673, %v1696
    %v1725 = vadd.f32 %v1674, %v1700
    %v1726 = vadd.f32 %v1675, %v1704
    %v1727 = vadd.f32 %v1676, %v1708
    %v1728 = vadd.f32 %v1677, %v1712
    %v1729 = vmax.f32 %v1721, 0.0
    %v1730 = vmax.f32 %v1722, 0.0
    %v1731 = vmax.f32 %v1723, 0.0
    %v1732 = vmax.f32 %v1724, 0.0
    %v1733 = vmax.f32 %v1725, 0.0
    %v1734 = vmax.f32 %v1726, 0.0
    %v1735 = vmax.f32 %v1727, 0.0
    %v1736 = vmax.f32 %v1728, 0.0
    %v1737 = vmax.f32 %v1729, %v1733
    %v1738 = vmax.f32 %v1730, %v1734
    %v1739 = vmax.f32 %v1731, %v1735
    %v1740 = vmax.f32 %v1732, %v1736
    %v1741 = vld [vmem:[#allocation11] sm:$0xff]
    %v1742 = vld [vmem:[#allocation11 + $0x8] sm:$0xff]
    %v1743 = vld [vmem:[#allocation11 + $0x10] sm:$0xff]
    %v1744 = vld [vmem:[#allocation11 + $0x18] sm:$0xff]
    %v1745 = vld [vmem:[#allocation11 + $0x20] sm:$0xff]
    %v1746 = vld [vmem:[#allocation11 + $0x28] sm:$0xff]
    %v1747 = vld [vmem:[#allocation11 + $0x30] sm:$0xff]
    %v1748 = vld [vmem:[#allocation11 + $0x38] sm:$0xff]
    %v1749 = vld [vmem:[#allocation11 + $0x40] sm:$0xff]
    %v1750 = vld [vmem:[#allocation11 + $0x48] sm:$0xff]
    %v1751 = vld [vmem:[#allocation11 + $0x50] sm:$0xff]
    %v1752 = vld [vmem:[#allocation11 + $0x58] sm:$0xff]
    %v1753 = vld [vmem:[#allocation11 + $0x60] sm:$0xff]
    %v1754 = vld [vmem:[#allocation11 + $0x68] sm:$0xff]
    %v1755 = vld [vmem:[#allocation11 + $0x70] sm:$0xff]
    %v1756 = vld [vmem:[#allocation11 + $0x78] sm:$0xff]
    %v1757 = vld [vmem:[#allocation11 + $0x80] sm:$0xff]
    %v1758 = vld [vmem:[#allocation11 + $0x88] sm:$0xff]
    %v1759 = vld [vmem:[#allocation11 + $0x90] sm:$0xff]
    %v1760 = vld [vmem:[#allocation11 + $0x98] sm:$0xff]
    %v1761 = vld [vmem:[#allocation11 + $0xa0] sm:$0xff]
    %v1762 = vld [vmem:[#allocation11 + $0xa8] sm:$0xff]
    %v1763 = vld [vmem:[#allocation11 + $0xb0] sm:$0xff]
    %v1764 = vld [vmem:[#allocation11 + $0xb8] sm:$0xff]
    %v1765 = vld [vmem:[#allocation11 + $0xc0] sm:$0xff]
    %v1766 = vld [vmem:[#allocation11 + $0xc8] sm:$0xff]
    %v1767 = vld [vmem:[#allocation11 + $0xd0] sm:$0xff]
    %v1768 = vld [vmem:[#allocation11 + $0xd8] sm:$0xff]
    %v1769 = vld [vmem:[#allocation11 + $0xe0] sm:$0xff]
    %v1770 = vld [vmem:[#allocation11 + $0xe8] sm:$0xff]
    %v1771 = vld [vmem:[#allocation11 + $0xf0] sm:$0xff]
    %v1772 = vld [vmem:[#allocation11 + $0xf8] sm:$0xff]
    %v1773 = vld [vmem:[#allocation11 + $0x100] sm:$0xff]
    %v1774 = vld [vmem:[#allocation11 + $0x108] sm:$0xff]
    %v1775 = vld [vmem:[#allocation11 + $0x110] sm:$0xff]
    %v1776 = vld [vmem:[#allocation11 + $0x118] sm:$0xff]
    %v1777 = vld [vmem:[#allocation11 + $0x120] sm:$0xff]
    %v1778 = vld [vmem:[#allocation11 + $0x128] sm:$0xff]
    %v1779 = vld [vmem:[#allocation11 + $0x130] sm:$0xff]
    %v1780 = vld [vmem:[#allocation11 + $0x138] sm:$0xff]
    %v1781 = vld [vmem:[#allocation11 + $0x140] sm:$0xff]
    %v1782 = vld [vmem:[#allocation11 + $0x148] sm:$0xff]
    %v1783 = vld [vmem:[#allocation11 + $0x150] sm:$0xff]
    %v1784 = vld [vmem:[#allocation11 + $0x158] sm:$0xff]
    %v1785 = vld [vmem:[#allocation11 + $0x160] sm:$0xff]
    %v1786 = vld [vmem:[#allocation11 + $0x168] sm:$0xff]
    %v1787 = vld [vmem:[#allocation11 + $0x170] sm:$0xff]
    %v1788 = vld [vmem:[#allocation11 + $0x178] sm:$0xff]
    %v1789 = vld [vmem:[#allocation11 + $0x180] sm:$0xff]
    %v1790 = vld [vmem:[#allocation11 + $0x188] sm:$0xff]
    %v1791 = vld [vmem:[#allocation11 + $0x190] sm:$0xff]
    %v1792 = vld [vmem:[#allocation11 + $0x198] sm:$0xff]
    %v1793 = vld [vmem:[#allocation11 + $0x1a0] sm:$0xff]
    %v1794 = vld [vmem:[#allocation11 + $0x1a8] sm:$0xff]
    %v1795 = vld [vmem:[#allocation11 + $0x1b0] sm:$0xff]
    %v1796 = vld [vmem:[#allocation11 + $0x1b8] sm:$0xff]
    %v1797 = vld [vmem:[#allocation11 + $0x1c0] sm:$0xff]
    %v1798 = vld [vmem:[#allocation11 + $0x1c8] sm:$0xff]
    %v1799 = vld [vmem:[#allocation11 + $0x1d0] sm:$0xff]
    %v1800 = vld [vmem:[#allocation11 + $0x1d8] sm:$0xff]
    %v1801 = vld [vmem:[#allocation11 + $0x1e0] sm:$0xff]
    %v1802 = vld [vmem:[#allocation11 + $0x1e8] sm:$0xff]
    %v1803 = vld [vmem:[#allocation11 + $0x1f0] sm:$0xff]
    %v1804 = vld [vmem:[#allocation11 + $0x1f8] sm:$0xff]
    %v1805 = vld [vmem:[#allocation11 + $0x200] sm:$0xff]
    %v1806 = vld [vmem:[#allocation11 + $0x208] sm:$0xff]
    %v1807 = vld [vmem:[#allocation11 + $0x210] sm:$0xff]
    %v1808 = vld [vmem:[#allocation11 + $0x218] sm:$0xff]
    %v1809 = vld [vmem:[#allocation11 + $0x220] sm:$0xff]
    %v1810 = vld [vmem:[#allocation11 + $0x228] sm:$0xff]
    %v1811 = vld [vmem:[#allocation11 + $0x230] sm:$0xff]
    %v1812 = vld [vmem:[#allocation11 + $0x238] sm:$0xff]
    %v1813 = vld [vmem:[#allocation11 + $0x240] sm:$0xff]
    %v1814 = vld [vmem:[#allocation11 + $0x248] sm:$0xff]
    %v1815 = vld [vmem:[#allocation11 + $0x250] sm:$0xff]
    %v1816 = vld [vmem:[#allocation11 + $0x258] sm:$0xff]
    %v1817 = vld [vmem:[#allocation11 + $0x260] sm:$0xff]
    %v1818 = vld [vmem:[#allocation11 + $0x268] sm:$0xff]
    %v1819 = vld [vmem:[#allocation11 + $0x270] sm:$0xff]
    %v1820 = vld [vmem:[#allocation11 + $0x278] sm:$0xff]
    %v1821 = vld [vmem:[#allocation11 + $0x280] sm:$0xff]
    %v1822 = vld [vmem:[#allocation11 + $0x288] sm:$0xff]
    %v1823 = vld [vmem:[#allocation11 + $0x290] sm:$0xff]
    %v1824 = vld [vmem:[#allocation11 + $0x298] sm:$0xff]
    %v1825 = vld [vmem:[#allocation11 + $0x2a0] sm:$0xff]
    %v1826 = vld [vmem:[#allocation11 + $0x2a8] sm:$0xff]
    %v1827 = vld [vmem:[#allocation11 + $0x2b0] sm:$0xff]
    %v1828 = vld [vmem:[#allocation11 + $0x2b8] sm:$0xff]
    %v1829 = vld [vmem:[#allocation11 + $0x2c0] sm:$0xff]
    %v1830 = vld [vmem:[#allocation11 + $0x2c8] sm:$0xff]
    %v1831 = vld [vmem:[#allocation11 + $0x2d0] sm:$0xff]
    %v1832 = vld [vmem:[#allocation11 + $0x2d8] sm:$0xff]
    %v1833 = vld [vmem:[#allocation11 + $0x2e0] sm:$0xff]
    %v1834 = vld [vmem:[#allocation11 + $0x2e8] sm:$0xff]
    %v1835 = vld [vmem:[#allocation11 + $0x2f0] sm:$0xff]
    %v1836 = vld [vmem:[#allocation11 + $0x2f8] sm:$0xff]
    %v1837 = vld [vmem:[#allocation11 + $0x300] sm:$0xff]
    %v1838 = vld [vmem:[#allocation11 + $0x308] sm:$0xff]
    %v1839 = vld [vmem:[#allocation11 + $0x310] sm:$0xff]
    %v1840 = vld [vmem:[#allocation11 + $0x318] sm:$0xff]
    %v1841 = vld [vmem:[#allocation11 + $0x320] sm:$0xff]
    %v1842 = vld [vmem:[#allocation11 + $0x328] sm:$0xff]
    %v1843 = vld [vmem:[#allocation11 + $0x330] sm:$0xff]
    %v1844 = vld [vmem:[#allocation11 + $0x338] sm:$0xff]
    %v1845 = vld [vmem:[#allocation11 + $0x340] sm:$0xff]
    %v1846 = vld [vmem:[#allocation11 + $0x348] sm:$0xff]
    %v1847 = vld [vmem:[#allocation11 + $0x350] sm:$0xff]
    %v1848 = vld [vmem:[#allocation11 + $0x358] sm:$0xff]
    %v1849 = vld [vmem:[#allocation11 + $0x360] sm:$0xff]
    %v1850 = vld [vmem:[#allocation11 + $0x368] sm:$0xff]
    %v1851 = vld [vmem:[#allocation11 + $0x370] sm:$0xff]
    %v1852 = vld [vmem:[#allocation11 + $0x378] sm:$0xff]
    %v1853 = vld [vmem:[#allocation11 + $0x380] sm:$0xff]
    %v1854 = vld [vmem:[#allocation11 + $0x388] sm:$0xff]
    %v1855 = vld [vmem:[#allocation11 + $0x390] sm:$0xff]
    %v1856 = vld [vmem:[#allocation11 + $0x398] sm:$0xff]
    %v1857 = vld [vmem:[#allocation11 + $0x3a0] sm:$0xff]
    %v1858 = vld [vmem:[#allocation11 + $0x3a8] sm:$0xff]
    %v1859 = vld [vmem:[#allocation11 + $0x3b0] sm:$0xff]
    %v1860 = vld [vmem:[#allocation11 + $0x3b8] sm:$0xff]
    %v1861 = vld [vmem:[#allocation11 + $0x3c0] sm:$0xff]
    %v1862 = vld [vmem:[#allocation11 + $0x3c8] sm:$0xff]
    %v1863 = vld [vmem:[#allocation11 + $0x3d0] sm:$0xff]
    %v1864 = vld [vmem:[#allocation11 + $0x3d8] sm:$0xff]
    %v1865 = vld [vmem:[#allocation11 + $0x3e0] sm:$0xff]
    %v1866 = vld [vmem:[#allocation11 + $0x3e8] sm:$0xff]
    %v1867 = vld [vmem:[#allocation11 + $0x3f0] sm:$0xff]
    %v1868 = vld [vmem:[#allocation11 + $0x3f8] sm:$0xff]
    %v1869 = vld [vmem:[#allocation11 + $0x400] sm:$0xff]
    %v1870 = vld [vmem:[#allocation11 + $0x408] sm:$0xff]
    %v1871 = vld [vmem:[#allocation11 + $0x410] sm:$0xff]
    %v1872 = vld [vmem:[#allocation11 + $0x418] sm:$0xff]
    %v1873 = vld [vmem:[#allocation11 + $0x420] sm:$0xff]
    %v1874 = vld [vmem:[#allocation11 + $0x428] sm:$0xff]
    %v1875 = vld [vmem:[#allocation11 + $0x430] sm:$0xff]
    %v1876 = vld [vmem:[#allocation11 + $0x438] sm:$0xff]
    %v1877 = vld [vmem:[#allocation11 + $0x440] sm:$0xff]
    %v1878 = vld [vmem:[#allocation11 + $0x448] sm:$0xff]
    %v1879 = vld [vmem:[#allocation11 + $0x450] sm:$0xff]
    %v1880 = vld [vmem:[#allocation11 + $0x458] sm:$0xff]
    %v1881 = vld [vmem:[#allocation11 + $0x460] sm:$0xff]
    %v1882 = vld [vmem:[#allocation11 + $0x468] sm:$0xff]
    %v1883 = vld [vmem:[#allocation11 + $0x470] sm:$0xff]
    %v1884 = vld [vmem:[#allocation11 + $0x478] sm:$0xff]
    %v1885 = vld [vmem:[#allocation11 + $0x480] sm:$0xff]
    %v1886 = vld [vmem:[#allocation11 + $0x488] sm:$0xff]
    %v1887 = vld [vmem:[#allocation11 + $0x490] sm:$0xff]
    %v1888 = vld [vmem:[#allocation11 + $0x498] sm:$0xff]
    %v1889 = vld [vmem:[#allocation11 + $0x4a0] sm:$0xff]
    %v1890 = vld [vmem:[#allocation11 + $0x4a8] sm:$0xff]
    %v1891 = vld [vmem:[#allocation11 + $0x4b0] sm:$0xff]
    %v1892 = vld [vmem:[#allocation11 + $0x4b8] sm:$0xff]
    %v1893 = vld [vmem:[#allocation11 + $0x4c0] sm:$0xff]
    %v1894 = vld [vmem:[#allocation11 + $0x4c8] sm:$0xff]
    %v1895 = vld [vmem:[#allocation11 + $0x4d0] sm:$0xff]
    %v1896 = vld [vmem:[#allocation11 + $0x4d8] sm:$0xff]
    %v1897 = vld [vmem:[#allocation11 + $0x4e0] sm:$0xff]
    %v1898 = vld [vmem:[#allocation11 + $0x4e8] sm:$0xff]
    %v1899 = vld [vmem:[#allocation11 + $0x4f0] sm:$0xff]
    %v1900 = vld [vmem:[#allocation11 + $0x4f8] sm:$0xff]
    %v1901 = vld [vmem:[#allocation11 + $0x500] sm:$0xff]
    %v1902 = vld [vmem:[#allocation11 + $0x508] sm:$0xff]
    %v1903 = vld [vmem:[#allocation11 + $0x510] sm:$0xff]
    %v1904 = vld [vmem:[#allocation11 + $0x518] sm:$0xff]
    %v1905 = vld [vmem:[#allocation11 + $0x520] sm:$0xff]
    %v1906 = vld [vmem:[#allocation11 + $0x528] sm:$0xff]
    %v1907 = vld [vmem:[#allocation11 + $0x530] sm:$0xff]
    %v1908 = vld [vmem:[#allocation11 + $0x538] sm:$0xff]
    %v1909 = vld [vmem:[#allocation11 + $0x540] sm:$0xff]
    %v1910 = vld [vmem:[#allocation11 + $0x548] sm:$0xff]
    %v1911 = vld [vmem:[#allocation11 + $0x550] sm:$0xff]
    %v1912 = vld [vmem:[#allocation11 + $0x558] sm:$0xff]
    %v1913 = vld [vmem:[#allocation11 + $0x560] sm:$0xff]
    %v1914 = vld [vmem:[#allocation11 + $0x568] sm:$0xff]
    %v1915 = vld [vmem:[#allocation11 + $0x570] sm:$0xff]
    %v1916 = vld [vmem:[#allocation11 + $0x578] sm:$0xff]
    %v1917 = vld [vmem:[#allocation11 + $0x580] sm:$0xff]
    %v1918 = vld [vmem:[#allocation11 + $0x588] sm:$0xff]
    %v1919 = vld [vmem:[#allocation11 + $0x590] sm:$0xff]
    %v1920 = vld [vmem:[#allocation11 + $0x598] sm:$0xff]
    %v1921 = vld [vmem:[#allocation11 + $0x5a0] sm:$0xff]
    %v1922 = vld [vmem:[#allocation11 + $0x5a8] sm:$0xff]
    %v1923 = vld [vmem:[#allocation11 + $0x5b0] sm:$0xff]
    %v1924 = vld [vmem:[#allocation11 + $0x5b8] sm:$0xff]
    %v1925 = vld [vmem:[#allocation11 + $0x5c0] sm:$0xff]
    %v1926 = vld [vmem:[#allocation11 + $0x5c8] sm:$0xff]
    %v1927 = vld [vmem:[#allocation11 + $0x5d0] sm:$0xff]
    %v1928 = vld [vmem:[#allocation11 + $0x5d8] sm:$0xff]
    %v1929 = vld [vmem:[#allocation11 + $0x5e0] sm:$0xff]
    %v1930 = vld [vmem:[#allocation11 + $0x5e8] sm:$0xff]
    %v1931 = vld [vmem:[#allocation11 + $0x5f0] sm:$0xff]
    %v1932 = vld [vmem:[#allocation11 + $0x5f8] sm:$0xff]
    %v1933 = vld [vmem:[#allocation11 + $0x600] sm:$0xff]
    %v1934 = vld [vmem:[#allocation11 + $0x608] sm:$0xff]
    %v1935 = vld [vmem:[#allocation11 + $0x610] sm:$0xff]
    %v1936 = vld [vmem:[#allocation11 + $0x618] sm:$0xff]
    %v1937 = vld [vmem:[#allocation11 + $0x620] sm:$0xff]
    %v1938 = vld [vmem:[#allocation11 + $0x628] sm:$0xff]
    %v1939 = vld [vmem:[#allocation11 + $0x630] sm:$0xff]
    %v1940 = vld [vmem:[#allocation11 + $0x638] sm:$0xff]
    %v1941 = vld [vmem:[#allocation11 + $0x640] sm:$0xff]
    %v1942 = vld [vmem:[#allocation11 + $0x648] sm:$0xff]
    %v1943 = vld [vmem:[#allocation11 + $0x650] sm:$0xff]
    %v1944 = vld [vmem:[#allocation11 + $0x658] sm:$0xff]
    %v1945 = vld [vmem:[#allocation11 + $0x660] sm:$0xff]
    %v1946 = vld [vmem:[#allocation11 + $0x668] sm:$0xff]
    %v1947 = vld [vmem:[#allocation11 + $0x670] sm:$0xff]
    %v1948 = vld [vmem:[#allocation11 + $0x678] sm:$0xff]
    %v1949 = vld [vmem:[#allocation11 + $0x680] sm:$0xff]
    %v1950 = vld [vmem:[#allocation11 + $0x688] sm:$0xff]
    %v1951 = vld [vmem:[#allocation11 + $0x690] sm:$0xff]
    %v1952 = vld [vmem:[#allocation11 + $0x698] sm:$0xff]
    %v1953 = vld [vmem:[#allocation11 + $0x6a0] sm:$0xff]
    %v1954 = vld [vmem:[#allocation11 + $0x6a8] sm:$0xff]
    %v1955 = vld [vmem:[#allocation11 + $0x6b0] sm:$0xff]
    %v1956 = vld [vmem:[#allocation11 + $0x6b8] sm:$0xff]
    %v1957 = vld [vmem:[#allocation11 + $0x6c0] sm:$0xff]
    %v1958 = vld [vmem:[#allocation11 + $0x6c8] sm:$0xff]
    %v1959 = vld [vmem:[#allocation11 + $0x6d0] sm:$0xff]
    %v1960 = vld [vmem:[#allocation11 + $0x6d8] sm:$0xff]
    %v1961 = vld [vmem:[#allocation11 + $0x6e0] sm:$0xff]
    %v1962 = vld [vmem:[#allocation11 + $0x6e8] sm:$0xff]
    %v1963 = vld [vmem:[#allocation11 + $0x6f0] sm:$0xff]
    %v1964 = vld [vmem:[#allocation11 + $0x6f8] sm:$0xff]
    %v1965 = vld [vmem:[#allocation11 + $0x700] sm:$0xff]
    %v1966 = vld [vmem:[#allocation11 + $0x708] sm:$0xff]
    %v1967 = vld [vmem:[#allocation11 + $0x710] sm:$0xff]
    %v1968 = vld [vmem:[#allocation11 + $0x718] sm:$0xff]
    %v1969 = vld [vmem:[#allocation11 + $0x720] sm:$0xff]
    %v1970 = vld [vmem:[#allocation11 + $0x728] sm:$0xff]
    %v1971 = vld [vmem:[#allocation11 + $0x730] sm:$0xff]
    %v1972 = vld [vmem:[#allocation11 + $0x738] sm:$0xff]
    %v1973 = vld [vmem:[#allocation11 + $0x740] sm:$0xff]
    %v1974 = vld [vmem:[#allocation11 + $0x748] sm:$0xff]
    %v1975 = vld [vmem:[#allocation11 + $0x750] sm:$0xff]
    %v1976 = vld [vmem:[#allocation11 + $0x758] sm:$0xff]
    %v1977 = vld [vmem:[#allocation11 + $0x760] sm:$0xff]
    %v1978 = vld [vmem:[#allocation11 + $0x768] sm:$0xff]
    %v1979 = vld [vmem:[#allocation11 + $0x770] sm:$0xff]
    %v1980 = vld [vmem:[#allocation11 + $0x778] sm:$0xff]
    %v1981 = vld [vmem:[#allocation11 + $0x780] sm:$0xff]
    %v1982 = vld [vmem:[#allocation11 + $0x788] sm:$0xff]
    %v1983 = vld [vmem:[#allocation11 + $0x790] sm:$0xff]
    %v1984 = vld [vmem:[#allocation11 + $0x798] sm:$0xff]
    %v1985 = vld [vmem:[#allocation11 + $0x7a0] sm:$0xff]
    %v1986 = vld [vmem:[#allocation11 + $0x7a8] sm:$0xff]
    %v1987 = vld [vmem:[#allocation11 + $0x7b0] sm:$0xff]
    %v1988 = vld [vmem:[#allocation11 + $0x7b8] sm:$0xff]
    %v1989 = vld [vmem:[#allocation11 + $0x7c0] sm:$0xff]
    %v1990 = vld [vmem:[#allocation11 + $0x7c8] sm:$0xff]
    %v1991 = vld [vmem:[#allocation11 + $0x7d0] sm:$0xff]
    %v1992 = vld [vmem:[#allocation11 + $0x7d8] sm:$0xff]
    %v1993 = vld [vmem:[#allocation11 + $0x7e0] sm:$0xff]
    %v1994 = vld [vmem:[#allocation11 + $0x7e8] sm:$0xff]
    %v1995 = vld [vmem:[#allocation11 + $0x7f0] sm:$0xff]
    %v1996 = vld [vmem:[#allocation11 + $0x7f8] sm:$0xff]
    %1997 = vmatprep.subr.mxu0 %v1742
    %1998 = vmatpush1.msra.mxu0 %v1741
    %1999 = vmatprep.subr.mxu0 %v1746
    %2000 = vmatpush1.msra.mxu0 %v1745
    %2001 = vmatprep.subr.mxu0 %v1750
    %2002 = vmatpush1.msra.mxu0 %v1749
    %2003 = vmatprep.subr.mxu0 %v1754
    %2004 = vmatpush1.msra.mxu0 %v1753
    %2005 = vmatprep.subr.mxu0 %v1758
    %2006 = vmatpush1.msra.mxu0 %v1757
    %2007 = vmatprep.subr.mxu0 %v1762
    %2008 = vmatpush1.msra.mxu0 %v1761
    %2009 = vmatprep.subr.mxu0 %v1766
    %2010 = vmatpush1.msra.mxu0 %v1765
    %2011 = vmatprep.subr.mxu0 %v1770
    %2012 = vmatpush1.msra.mxu0 %v1769
    %2013 = vmatprep.subr.mxu0 %v1774
    %2014 = vmatpush1.msra.mxu0 %v1773
    %2015 = vmatprep.subr.mxu0 %v1778
    %2016 = vmatpush1.msra.mxu0 %v1777
    %2017 = vmatprep.subr.mxu0 %v1782
    %2018 = vmatpush1.msra.mxu0 %v1781
    %2019 = vmatprep.subr.mxu0 %v1786
    %2020 = vmatpush1.msra.mxu0 %v1785
    %2021 = vmatprep.subr.mxu0 %v1790
    %2022 = vmatpush1.msra.mxu0 %v1789
    %2023 = vmatprep.subr.mxu0 %v1794
    %2024 = vmatpush1.msra.mxu0 %v1793
    %2025 = vmatprep.subr.mxu0 %v1798
    %2026 = vmatpush1.msra.mxu0 %v1797
    %2027 = vmatprep.subr.mxu0 %v1802
    %2028 = vmatpush1.msra.mxu0 %v1801
    %2029 = vmatprep.subr.mxu0 %v1806
    %2030 = vmatpush1.msra.mxu0 %v1805
    %2031 = vmatprep.subr.mxu0 %v1810
    %2032 = vmatpush1.msra.mxu0 %v1809
    %2033 = vmatprep.subr.mxu0 %v1814
    %2034 = vmatpush1.msra.mxu0 %v1813
    %2035 = vmatprep.subr.mxu0 %v1818
    %2036 = vmatpush1.msra.mxu0 %v1817
    %2037 = vmatprep.subr.mxu0 %v1822
    %2038 = vmatpush1.msra.mxu0 %v1821
    %2039 = vmatprep.subr.mxu0 %v1826
    %2040 = vmatpush1.msra.mxu0 %v1825
    %2041 = vmatprep.subr.mxu0 %v1830
    %2042 = vmatpush1.msra.mxu0 %v1829
    %2043 = vmatprep.subr.mxu0 %v1834
    %2044 = vmatpush1.msra.mxu0 %v1833
    %2045 = vmatprep.subr.mxu0 %v1838
    %2046 = vmatpush1.msra.mxu0 %v1837
    %2047 = vmatprep.subr.mxu0 %v1842
    %2048 = vmatpush1.msra.mxu0 %v1841
    %2049 = vmatprep.subr.mxu0 %v1846
    %2050 = vmatpush1.msra.mxu0 %v1845
    %2051 = vmatprep.subr.mxu0 %v1850
    %2052 = vmatpush1.msra.mxu0 %v1849
    %2053 = vmatprep.subr.mxu0 %v1854
    %2054 = vmatpush1.msra.mxu0 %v1853
    %2055 = vmatprep.subr.mxu0 %v1858
    %2056 = vmatpush1.msra.mxu0 %v1857
    %2057 = vmatprep.subr.mxu0 %v1862
    %2058 = vmatpush1.msra.mxu0 %v1861
    %2059 = vmatprep.subr.mxu0 %v1866
    %2060 = vmatpush1.msra.mxu0 %v1865
    %2061 = vmatprep.mubr.f32.mxu0 %v1738
    %2062 = vmatmul.mubr.f32.gmra.mrb[0].mxu0 %v1737
    %v2063 = vpop.f32.mrb[0].mxu0
    %v2064 = vadd.f32 0.0, %v2063
    %v2065 = vpop.f32.mrb[0].mxu0
    %v2066 = vadd.f32 0.0, %v2065
    %2067 = vdwg.mxu0
    %2068 = vmatprep.subr.mxu0 %v1870
    %2069 = vmatpush1.msra.mxu0 %v1869
    %2070 = vmatprep.subr.mxu0 %v1874
    %2071 = vmatpush1.msra.mxu0 %v1873
    %2072 = vmatprep.subr.mxu0 %v1878
    %2073 = vmatpush1.msra.mxu0 %v1877
    %2074 = vmatprep.subr.mxu0 %v1882
    %2075 = vmatpush1.msra.mxu0 %v1881
    %2076 = vmatprep.subr.mxu0 %v1886
    %2077 = vmatpush1.msra.mxu0 %v1885
    %2078 = vmatprep.subr.mxu0 %v1890
    %2079 = vmatpush1.msra.mxu0 %v1889
    %2080 = vmatprep.subr.mxu0 %v1894
    %2081 = vmatpush1.msra.mxu0 %v1893
    %2082 = vmatprep.subr.mxu0 %v1898
    %2083 = vmatpush1.msra.mxu0 %v1897
    %2084 = vmatprep.subr.mxu0 %v1902
    %2085 = vmatpush1.msra.mxu0 %v1901
    %2086 = vmatprep.subr.mxu0 %v1906
    %2087 = vmatpush1.msra.mxu0 %v1905
    %2088 = vmatprep.subr.mxu0 %v1910
    %2089 = vmatpush1.msra.mxu0 %v1909
    %2090 = vmatprep.subr.mxu0 %v1914
    %2091 = vmatpush1.msra.mxu0 %v1913
    %2092 = vmatprep.subr.mxu0 %v1918
    %2093 = vmatpush1.msra.mxu0 %v1917
    %2094 = vmatprep.subr.mxu0 %v1922
    %2095 = vmatpush1.msra.mxu0 %v1921
    %2096 = vmatprep.subr.mxu0 %v1926
    %2097 = vmatpush1.msra.mxu0 %v1925
    %2098 = vmatprep.subr.mxu0 %v1930
    %2099 = vmatpush1.msra.mxu0 %v1929
    %2100 = vmatprep.subr.mxu0 %v1934
    %2101 = vmatpush1.msra.mxu0 %v1933
    %2102 = vmatprep.subr.mxu0 %v1938
    %2103 = vmatpush1.msra.mxu0 %v1937
    %2104 = vmatprep.subr.mxu0 %v1942
    %2105 = vmatpush1.msra.mxu0 %v1941
    %2106 = vmatprep.subr.mxu0 %v1946
    %2107 = vmatpush1.msra.mxu0 %v1945
    %2108 = vmatprep.subr.mxu0 %v1950
    %2109 = vmatpush1.msra.mxu0 %v1949
    %2110 = vmatprep.subr.mxu0 %v1954
    %2111 = vmatpush1.msra.mxu0 %v1953
    %2112 = vmatprep.subr.mxu0 %v1958
    %2113 = vmatpush1.msra.mxu0 %v1957
    %2114 = vmatprep.subr.mxu0 %v1962
    %2115 = vmatpush1.msra.mxu0 %v1961
    %2116 = vmatprep.subr.mxu0 %v1966
    %2117 = vmatpush1.msra.mxu0 %v1965
    %2118 = vmatprep.subr.mxu0 %v1970
    %2119 = vmatpush1.msra.mxu0 %v1969
    %2120 = vmatprep.subr.mxu0 %v1974
    %2121 = vmatpush1.msra.mxu0 %v1973
    %2122 = vmatprep.subr.mxu0 %v1978
    %2123 = vmatpush1.msra.mxu0 %v1977
    %2124 = vmatprep.subr.mxu0 %v1982
    %2125 = vmatpush1.msra.mxu0 %v1981
    %2126 = vmatprep.subr.mxu0 %v1986
    %2127 = vmatpush1.msra.mxu0 %v1985
    %2128 = vmatprep.subr.mxu0 %v1990
    %2129 = vmatpush1.msra.mxu0 %v1989
    %2130 = vmatprep.subr.mxu0 %v1994
    %2131 = vmatpush1.msra.mxu0 %v1993
    %2132 = vmatprep.mubr.f32.mxu0 %v1740
    %2133 = vmatmul.mubr.f32.gmra.mrb[0].mxu0 %v1739
    %v2134 = vpop.f32.mrb[0].mxu0
    %v2135 = vadd.f32 %v2064, %v2134
    %v2136 = vpop.f32.mrb[0].mxu0
    %v2137 = vadd.f32 %v2066, %v2136
    %2138 = vdwg.mxu0
    %2139 = vmatprep.subr.mxu0 %v1744
    %2140 = vmatpush1.msra.mxu0 %v1743
    %2141 = vmatprep.subr.mxu0 %v1748
    %2142 = vmatpush1.msra.mxu0 %v1747
    %2143 = vmatprep.subr.mxu0 %v1752
    %2144 = vmatpush1.msra.mxu0 %v1751
    %2145 = vmatprep.subr.mxu0 %v1756
    %2146 = vmatpush1.msra.mxu0 %v1755
    %2147 = vmatprep.subr.mxu0 %v1760
    %2148 = vmatpush1.msra.mxu0 %v1759
    %2149 = vmatprep.subr.mxu0 %v1764
    %2150 = vmatpush1.msra.mxu0 %v1763
    %2151 = vmatprep.subr.mxu0 %v1768
    %2152 = vmatpush1.msra.mxu0 %v1767
    %2153 = vmatprep.subr.mxu0 %v1772
    %2154 = vmatpush1.msra.mxu0 %v1771
    %2155 = vmatprep.subr.mxu0 %v1776
    %2156 = vmatpush1.msra.mxu0 %v1775
    %2157 = vmatprep.subr.mxu0 %v1780
    %2158 = vmatpush1.msra.mxu0 %v1779
    %2159 = vmatprep.subr.mxu0 %v1784
    %2160 = vmatpush1.msra.mxu0 %v1783
    %2161 = vmatprep.subr.mxu0 %v1788
    %2162 = vmatpush1.msra.mxu0 %v1787
    %2163 = vmatprep.subr.mxu0 %v1792
    %2164 = vmatpush1.msra.mxu0 %v1791
    %2165 = vmatprep.subr.mxu0 %v1796
    %2166 = vmatpush1.msra.mxu0 %v1795
    %2167 = vmatprep.subr.mxu0 %v1800
    %2168 = vmatpush1.msra.mxu0 %v1799
    %2169 = vmatprep.subr.mxu0 %v1804
    %2170 = vmatpush1.msra.mxu0 %v1803
    %2171 = vmatprep.subr.mxu0 %v1808
    %2172 = vmatpush1.msra.mxu0 %v1807
    %2173 = vmatprep.subr.mxu0 %v1812
    %2174 = vmatpush1.msra.mxu0 %v1811
    %2175 = vmatprep.subr.mxu0 %v1816
    %2176 = vmatpush1.msra.mxu0 %v1815
    %2177 = vmatprep.subr.mxu0 %v1820
    %2178 = vmatpush1.msra.mxu0 %v1819
    %2179 = vmatprep.subr.mxu0 %v1824
    %2180 = vmatpush1.msra.mxu0 %v1823
    %2181 = vmatprep.subr.mxu0 %v1828
    %2182 = vmatpush1.msra.mxu0 %v1827
    %2183 = vmatprep.subr.mxu0 %v1832
    %2184 = vmatpush1.msra.mxu0 %v1831
    %2185 = vmatprep.subr.mxu0 %v1836
    %2186 = vmatpush1.msra.mxu0 %v1835
    %2187 = vmatprep.subr.mxu0 %v1840
    %2188 = vmatpush1.msra.mxu0 %v1839
    %2189 = vmatprep.subr.mxu0 %v1844
    %2190 = vmatpush1.msra.mxu0 %v1843
    %2191 = vmatprep.subr.mxu0 %v1848
    %2192 = vmatpush1.msra.mxu0 %v1847
    %2193 = vmatprep.subr.mxu0 %v1852
    %2194 = vmatpush1.msra.mxu0 %v1851
    %2195 = vmatprep.subr.mxu0 %v1856
    %2196 = vmatpush1.msra.mxu0 %v1855
    %2197 = vmatprep.subr.mxu0 %v1860
    %2198 = vmatpush1.msra.mxu0 %v1859
    %2199 = vmatprep.subr.mxu0 %v1864
    %2200 = vmatpush1.msra.mxu0 %v1863
    %2201 = vmatprep.subr.mxu0 %v1868
    %2202 = vmatpush1.msra.mxu0 %v1867
    %2203 = vmatprep.mubr.f32.mxu0 %v1738
    %2204 = vmatmul.mubr.f32.gmra.mrb[0].mxu0 %v1737
    %v2205 = vpop.f32.mrb[0].mxu0
    %v2206 = vadd.f32 0.0, %v2205
    %v2207 = vpop.f32.mrb[0].mxu0
    %v2208 = vadd.f32 0.0, %v2207
    %2209 = vdwg.mxu0
    %2210 = vmatprep.subr.mxu0 %v1872
    %2211 = vmatpush1.msra.mxu0 %v1871
    %2212 = vmatprep.subr.mxu0 %v1876
    %2213 = vmatpush1.msra.mxu0 %v1875
    %2214 = vmatprep.subr.mxu0 %v1880
    %2215 = vmatpush1.msra.mxu0 %v1879
    %2216 = vmatprep.subr.mxu0 %v1884
    %2217 = vmatpush1.msra.mxu0 %v1883
    %2218 = vmatprep.subr.mxu0 %v1888
    %2219 = vmatpush1.msra.mxu0 %v1887
    %2220 = vmatprep.subr.mxu0 %v1892
    %2221 = vmatpush1.msra.mxu0 %v1891
    %2222 = vmatprep.subr.mxu0 %v1896
    %2223 = vmatpush1.msra.mxu0 %v1895
    %2224 = vmatprep.subr.mxu0 %v1900
    %2225 = vmatpush1.msra.mxu0 %v1899
    %2226 = vmatprep.subr.mxu0 %v1904
    %2227 = vmatpush1.msra.mxu0 %v1903
    %2228 = vmatprep.subr.mxu0 %v1908
    %2229 = vmatpush1.msra.mxu0 %v1907
    %2230 = vmatprep.subr.mxu0 %v1912
    %2231 = vmatpush1.msra.mxu0 %v1911
    %2232 = vmatprep.subr.mxu0 %v1916
    %2233 = vmatpush1.msra.mxu0 %v1915
    %2234 = vmatprep.subr.mxu0 %v1920
    %2235 = vmatpush1.msra.mxu0 %v1919
    %2236 = vmatprep.subr.mxu0 %v1924
    %2237 = vmatpush1.msra.mxu0 %v1923
    %2238 = vmatprep.subr.mxu0 %v1928
    %2239 = vmatpush1.msra.mxu0 %v1927
    %2240 = vmatprep.subr.mxu0 %v1932
    %2241 = vmatpush1.msra.mxu0 %v1931
    %2242 = vmatprep.subr.mxu0 %v1936
    %2243 = vmatpush1.msra.mxu0 %v1935
    %2244 = vmatprep.subr.mxu0 %v1940
    %2245 = vmatpush1.msra.mxu0 %v1939
    %2246 = vmatprep.subr.mxu0 %v1944
    %2247 = vmatpush1.msra.mxu0 %v1943
    %2248 = vmatprep.subr.mxu0 %v1948
    %2249 = vmatpush1.msra.mxu0 %v1947
    %2250 = vmatprep.subr.mxu0 %v1952
    %2251 = vmatpush1.msra.mxu0 %v1951
    %2252 = vmatprep.subr.mxu0 %v1956
    %2253 = vmatpush1.msra.mxu0 %v1955
    %2254 = vmatprep.subr.mxu0 %v1960
    %2255 = vmatpush1.msra.mxu0 %v1959
    %2256 = vmatprep.subr.mxu0 %v1964
    %2257 = vmatpush1.msra.mxu0 %v1963
    %2258 = vmatprep.subr.mxu0 %v1968
    %2259 = vmatpush1.msra.mxu0 %v1967
    %2260 = vmatprep.subr.mxu0 %v1972
    %2261 = vmatpush1.msra.mxu0 %v1971
    %2262 = vmatprep.subr.mxu0 %v1976
    %2263 = vmatpush1.msra.mxu0 %v1975
    %2264 = vmatprep.subr.mxu0 %v1980
    %2265 = vmatpush1.msra.mxu0 %v1979
    %2266 = vmatprep.subr.mxu0 %v1984
    %2267 = vmatpush1.msra.mxu0 %v1983
    %2268 = vmatprep.subr.mxu0 %v1988
    %2269 = vmatpush1.msra.mxu0 %v1987
    %2270 = vmatprep.subr.mxu0 %v1992
    %2271 = vmatpush1.msra.mxu0 %v1991
    %2272 = vmatprep.subr.mxu0 %v1996
    %2273 = vmatpush1.msra.mxu0 %v1995
    %2274 = vmatprep.mubr.f32.mxu0 %v1740
    %2275 = vmatmul.mubr.f32.gmra.mrb[0].mxu0 %v1739
    %v2276 = vpop.f32.mrb[0].mxu0
    %v2277 = vadd.f32 %v2206, %v2276
    %v2278 = vpop.f32.mrb[0].mxu0
    %v2279 = vadd.f32 %v2208, %v2278
    %2280 = vdwg.mxu0
    %v2281 = vld [vmem:[#allocation13] ss:$2 sm:$0xf]
    %v2283 = vlaneseq
    %v2284 = vshrl.u32 %v2283, 7
    %v2285 = vsub.s32 0, %v2284
    %v2286 = vrot.slane %v2281, %v2285
    %v2287 = vlaneseq
    %v2288 = vshrl.u32 %v2287, 7
    %v2289 = vsub.s32 1, %v2288
    %v2290 = vrot.slane %v2281, %v2289
    %v2291 = vlaneseq
    %v2292 = vshrl.u32 %v2291, 7
    %v2293 = vsub.s32 2, %v2292
    %v2294 = vrot.slane %v2281, %v2293
    %v2295 = vlaneseq
    %v2296 = vshrl.u32 %v2295, 7
    %v2297 = vsub.s32 3, %v2296
    %v2298 = vrot.slane %v2281, %v2297
    %v2303 = vmul.f32 %v2135, %v2286
    %v2304 = vmul.f32 %v2137, %v2290
    %v2305 = vmul.f32 %v2277, %v2294
    %v2306 = vmul.f32 %v2279, %v2298
    %s2307 = scalar_lea.vmem [#allocation13], 1
    %v2308 = vld [vmem:[%s2307] ss:$2 sm:$0xf]
    %v2310 = vlaneseq
    %v2311 = vshrl.u32 %v2310, 7
    %v2312 = vsub.s32 0, %v2311
    %v2313 = vrot.slane %v2308, %v2312
    %v2314 = vlaneseq
    %v2315 = vshrl.u32 %v2314, 7
    %v2316 = vsub.s32 1, %v2315
    %v2317 = vrot.slane %v2308, %v2316
    %v2318 = vlaneseq
    %v2319 = vshrl.u32 %v2318, 7
    %v2320 = vsub.s32 2, %v2319
    %v2321 = vrot.slane %v2308, %v2320
    %v2322 = vlaneseq
    %v2323 = vshrl.u32 %v2322, 7
    %v2324 = vsub.s32 3, %v2323
    %v2325 = vrot.slane %v2308, %v2324
    %v2330 = vadd.f32 %v2303, %v2313
    %v2331 = vadd.f32 %v2304, %v2317
    %v2332 = vadd.f32 %v2305, %v2321
    %v2333 = vadd.f32 %v2306, %v2325
    %v2334 = vmax.f32 %v2330, 0.0
    %v2335 = vmax.f32 %v2331, 0.0
    %v2336 = vmax.f32 %v2332, 0.0
    %v2337 = vmax.f32 %v2333, 0.0
    %v2338 = vmax.f32 %v2334, %v2336
    %v2339 = vmax.f32 %v2335, %v2337
    %2341 = vrot.lane.b32.xlu0 %v2338, 64
    %v2342 = vpop.permute.xlu0 %2341
    %v2344 = vadd.f32 %v2338, %v2342
    %v2345 = vadd.f32 %v2344, %v2339
    %2347 = vrot.lane.b32.xlu0 %v2339, 64
    %v2348 = vpop.permute.xlu0 %2347
    %v2350 = vadd.f32 %v2345, %v2348
    %v2351 = vmul.f32 %v2350, 0.25
    %vm2352 = vcmask 523264
    %2353 = vst.msk [vmem:[#allocation14] sm:$0xff] %vm2352, %v2351
    // Predicated region
    $region58: #{tpu_custom_call.1} parent=1 // pred_check
      _
    $region59: #{tpu_custom_call.1} parent=1 // pred_check_branch
      %2355 = sbr.rel (0) target = $region61
    $region60: #{tpu_custom_call.1} parent=1 // pred_region
      %s2357 = ssub.s32 128, 128
      %2358 = vsyncadd [#allocation4], %s2357
      %s2360 = sshll.u32 [#allocation14], 4
      %s2361 = int_to_ptr.vmem [resolvable:$true] %s2360
      %2363 = dma.vmem_to_hbm [thread:$0]  %s2361, 128, %s7, [#allocation4]
    $region61: #{tpu_custom_call.1} parent=1 // pred_fallthru
      _
    // Predicated region
    $region62: #{tpu_custom_call.1} parent=1 // pred_check
      _
    $region63: #{tpu_custom_call.1} parent=1 // pred_check_branch
      %2365 = sbr.rel (0) target = $region65
    $region64: #{tpu_custom_call.1} parent=1 // pred_region
      %2366 = dma.done [#allocation4], 128
    $region65: #{tpu_custom_call.1} parent=1 // pred_fallthru
      _
    %2367 = vsyncpa [#allocation3], 1
    %2368 = vsyncpa [#allocation6], 1
    %2369 = vsyncpa [#allocation9], 1
    %2370 = vsyncpa [#allocation12], 1
    %2371 = vsyncpa [#allocation4], 1

</llo_original>
